<compile_context>
chip_gen: v6e
topology: v6e:2x2x1
jax: 0.10.0
libtpu: 0.0.40
codegen_flags: <defaults>
</compile_context>

<pallas_src>
import jax
import jax.numpy as jnp
from jax.experimental import pallas as pl
from jax.experimental.pallas import tpu as pltpu

LANE = 128  # TPU lane width


def basic_block_forward(x_nchw, params):
    N, Cin, H, W = x_nchw.shape
    C = params["conv1_w"].shape[0]
    assert H % 2 == 0 and W % 2 == 0, "stride-2 path assumes even spatial dims"
    HO, WO = H // 2, W // 2
    MQ = HO * WO                      # rows per parity quadrant / conv2 output pixels
    K1 = 9 * Cin                      # conv1 packed K
    K2 = 9 * C + 9 * Cin              # conv2 + downsample packed K
    assert K1 <= LANE and K2 <= LANE and C <= LANE
    eps = 1e-5

    # ---------------- wrapper-side packing (cheap XLA at these sizes) ----------------
    # TODO(synk): at real ResNet sizes build patches in-kernel instead of wrapper im2col.
    x = jnp.transpose(x_nchw, (0, 2, 3, 1)).astype(jnp.float32)      # NCHW -> NHWC
    xpad = jnp.pad(x, ((0, 0), (1, 1), (1, 1), (0, 0)))              # 1-px halo only

    # conv1 patches (stride 1), rows ordered by output-pixel parity quadrant (a,b):
    #   row ((2a+b)*HO + i)*WO + j  <->  interior pixel (h,w) = (2i+a, 2j+b)
    #   lane = t*Cin + ci, tap t = dy*3 + dx
    p1 = jnp.stack([xpad[:, dy:dy + H, dx:dx + W, :]
                    for dy in range(3) for dx in range(3)], axis=3)   # (N,H,W,9,Cin)
    p1 = p1.reshape(N, HO, 2, WO, 2, K1)
    p1 = jnp.transpose(p1, (0, 2, 4, 1, 3, 5)).reshape(N, 4 * MQ, K1)
    x1 = jnp.pad(p1, ((0, 0), (0, 0), (0, LANE - K1))).astype(jnp.bfloat16)

    # downsample patches (stride 2) pre-placed at lanes [9C, 9C+9Cin) of the conv2 LHS
    pd = jnp.stack([xpad[:, dy:dy + 2 * HO:2, dx:dx + 2 * WO:2, :]
                    for dy in range(3) for dx in range(3)], axis=3)   # (N,HO,WO,9,Cin)
    pd = pd.reshape(N, MQ, 9 * Cin)
    xd = jnp.pad(pd, ((0, 0), (0, 0), (9 * C, LANE - K2))).astype(jnp.bfloat16)

    # eval-mode BN folded into conv1 (scale into weights, shift added post-matmul)
    scale1 = params["bn1_gamma"] * jax.lax.rsqrt(params["bn1_var"] + eps)
    shift1 = (params["conv1_b"] - params["bn1_mean"]) * scale1 + params["bn1_beta"]
    w1b = jnp.transpose(params["conv1_w"], (2, 3, 1, 0)).reshape(K1, C) * scale1[None, :]

    # Quadrant (a,b) writes phase plane (1-a, 1-b). Duplicate its conv1 weights (and
    # shift) into the lane block t*C of every conv2 tap t that reads that plane, so the
    # conv2 LHS can later be assembled with masked adds only (no lane movement ops).
    def taps_of_plane(rp, cp):
        return [dy * 3 + dx for dy in range(3) for dx in range(3)
                if dy % 2 == rp and dx % 2 == cp]

    W1 = jnp.zeros((4, LANE, LANE), jnp.float32)
    S1 = jnp.zeros((4, 1, LANE), jnp.float32)
    for a in range(2):
        for b in range(2):
            q = 2 * a + b
            for t in taps_of_plane(1 - a, 1 - b):
                W1 = W1.at[q, :K1, t * C:(t + 1) * C].set(w1b)
                S1 = S1.at[q, 0, t * C:(t + 1) * C].set(shift1)
    W1 = W1.astype(jnp.bfloat16)

    # conv2 + downsample fused RHS: rows [0,9C) = conv2 taps, rows [9C,K2) = downsample
    w2 = jnp.transpose(params["conv2_w"], (2, 3, 1, 0)).reshape(9 * C, C)
    wd = jnp.transpose(params["down_w"], (2, 3, 1, 0)).reshape(9 * Cin, C)
    W2 = jnp.pad(jnp.concatenate([w2, wd], axis=0),
                 ((0, LANE - K2), (0, LANE - C))).astype(jnp.bfloat16)
    B2 = jnp.pad(params["conv2_b"] + params["down_b"],
                 (0, LANE - C)).reshape(1, LANE).astype(jnp.float32)

    # ------------------------------ fused Pallas kernel ------------------------------
    def kernel(x1_ref, xd_ref, w1_ref, s1_ref, w2_ref, b2_ref, o_ref, phase_ref):
        # Zero the phase planes each step (~80 KiB bf16, ~20 vreg stores): the 1-wide
        # halo row/col of each plane is never written below and must read as zero.
        # (A program_id==0 guard would be skipped on the 2nd core under "parallel".)
        phase_ref[...] = jnp.zeros_like(phase_ref)

        # conv1 (+ folded BN + ReLU): one K=9*Cin matmul per parity quadrant, result
        # stored (duplicated into that plane's tap lane blocks by W1) into a phase
        # plane so every conv2 tap below is a contiguous slice.
        for a in range(2):
            for b in range(2):
                q = 2 * a + b
                y = jnp.dot(x1_ref[q * MQ:(q + 1) * MQ, :], w1_ref[q],
                            preferred_element_type=jnp.float32)       # (MQ, 128)
                y = jnp.maximum(y + s1_ref[q], 0.0).astype(jnp.bfloat16)
                phase_ref[2 * (1 - a) + (1 - b), a:a + HO, b:b + WO, :] = (
                    y.reshape(HO, WO, LANE))

        # conv2 + downsample: pack 9 y1 taps (lanes [0,9C)) + 9 x taps (lanes [9C,K2),
        # prebuilt in the wrapper) into ONE K=128 LHS via masked adds of contiguous
        # plane slices, then a single MXU matmul + fused bias + residual ReLU.
        lane = jax.lax.broadcasted_iota(jnp.int32, (MQ, LANE), 1)
        slab = xd_ref[...]                                            # (MQ, 128) bf16
        for t in range(9):
            dy, dx = divmod(t, 3)
            p = phase_ref[2 * (dy % 2) + (dx % 2),
                          dy // 2:dy // 2 + HO, dx // 2:dx // 2 + WO, :]
            p = p.reshape(MQ, LANE)
            m = (lane >= t * C) & (lane < (t + 1) * C)
            slab = slab + jnp.where(m, p, jnp.zeros_like(p))
        acc = jnp.dot(slab, w2_ref[...], preferred_element_type=jnp.float32)
        o_ref[...] = jnp.maximum(acc + b2_ref[...], 0.0)

    out = pl.pallas_call(
        kernel,
        out_shape=jax.ShapeDtypeStruct((N, MQ, LANE), jnp.float32),
        grid=(N,),   # one image per step; on single-TC v5e/v6e fold N into M if N grows
        in_specs=[
            pl.BlockSpec((None, 4 * MQ, LANE), lambda n: (n, 0, 0)),  # conv1 patches
            pl.BlockSpec((None, MQ, LANE), lambda n: (n, 0, 0)),      # downsample patches
            pl.BlockSpec((4, LANE, LANE), lambda n: (0, 0, 0)),       # conv1*BN weights (per quadrant)
            pl.BlockSpec((4, 1, LANE), lambda n: (0, 0, 0)),          # BN shift (per quadrant)
            pl.BlockSpec((LANE, LANE), lambda n: (0, 0)),             # conv2+downsample weights
            pl.BlockSpec((1, LANE), lambda n: (0, 0)),                # conv2_b + down_b
        ],
        out_specs=pl.BlockSpec((None, MQ, LANE), lambda n: (n, 0, 0)),
        scratch_shapes=[
            pltpu.VMEM((4, HO + 1, WO + 1, LANE), jnp.bfloat16),      # y1 phase planes
        ],
        compiler_params=pltpu.CompilerParams(
            dimension_semantics=("parallel",),
            vmem_limit_bytes=32 * 1024 * 1024,
        ),
    )(x1, xd, W1, S1, W2, B2)

    out = out.reshape(N, HO, WO, LANE)[..., :C]                       # drop lane padding
    return jnp.transpose(out, (0, 3, 1, 2))                           # NHWC -> NCHW


# ---------------- deterministic parameter init + pure-JAX reference -----------------

def init_params(key, in_channels=4, channels=8):
    ks = jax.random.split(key, 10)
    w = lambda k, s, sc=0.1: sc * jax.random.normal(k, s, jnp.float32)
    return {
        "conv1_w": w(ks[0], (channels, in_channels, 3, 3)),
        "conv1_b": w(ks[1], (channels,)),
        "bn1_gamma": 1.0 + 0.1 * jax.random.normal(ks[2], (channels,), jnp.float32),
        "bn1_beta": w(ks[3], (channels,)),
        "bn1_mean": w(ks[4], (channels,)),
        "bn1_var": jnp.abs(jax.random.normal(ks[5], (channels,), jnp.float32)) + 0.5,
        "conv2_w": w(ks[6], (channels, channels, 3, 3)),
        "conv2_b": w(ks[7], (channels,)),
        "down_w": w(ks[8], (channels, in_channels, 3, 3)),
        "down_b": w(ks[9], (channels,)),
    }


def _reference(x, params):
    def conv(x, w, b, stride):
        y = jax.lax.conv_general_dilated(x, w, (stride, stride), ((1, 1), (1, 1)),
                                         dimension_numbers=("NCHW", "OIHW", "NCHW"))
        return y + b[None, :, None, None]
    eps = 1e-5
    y = conv(x, params["conv1_w"], params["conv1_b"], 1)
    y = (y - params["bn1_mean"][None, :, None, None]) * jax.lax.rsqrt(
        params["bn1_var"][None, :, None, None] + eps) \
        * params["bn1_gamma"][None, :, None, None] + params["bn1_beta"][None, :, None, None]
    y = jnp.maximum(y, 0.0)
    y = conv(y, params["conv2_w"], params["conv2_b"], 2)
    ident = conv(x, params["down_w"], params["down_b"], 2)
    return jnp.maximum(y + ident, 0.0)


if __name__ == "__main__":
    key = jax.random.PRNGKey(0)
    kx, kp = jax.random.split(key)
    x = jax.random.normal(kx, (2, 4, 16, 16), jnp.float32)  # NCHW, like PyTorch
    params = init_params(kp, in_channels=4, channels=8)

    out = jax.block_until_ready(jax.jit(basic_block_forward)(x, params))
    ref = jax.block_until_ready(_reference(x, params))

    assert out.shape == (2, 8, 8, 8), out.shape
    # bf16 MXU operands (f32 accumulation / epilogue) -> slightly looser tolerance.
    assert jnp.allclose(out, ref, atol=4e-2, rtol=4e-2), float(jnp.max(jnp.abs(out - ref)))
    print("KERNEL_OK")
</pallas_src>

<mosaic_0001>
module attributes {stable_mosaic.version = 11 : i64} {
  func.func @kernel(%arg0: i32, %arg1: memref<1x256x128xbf16, #tpu.memory_space<vmem>>, %arg2: memref<1x64x128xbf16, #tpu.memory_space<vmem>>, %arg3: memref<4x128x128xbf16, #tpu.memory_space<vmem>>, %arg4: memref<4x1x128xf32, #tpu.memory_space<vmem>>, %arg5: memref<128x128xbf16, #tpu.memory_space<vmem>>, %arg6: memref<1x128xf32, #tpu.memory_space<vmem>>, %arg7: memref<1x64x128xf32, #tpu.memory_space<vmem>>, %arg8: memref<4x9x9x128xbf16, #tpu.memory_space<vmem>>) attributes {dimension_semantics = [#tpu.dimension_semantics<parallel>], iteration_bounds = array<i64: 2>, scalar_prefetch = 0 : i64, scratch_operands = 1 : i64, tpu.core_type = #tpu.core_type<tc>, window_params = [{transform_indices = @transform_0, window_bounds = array<i64: 1, 256, 128>}, {transform_indices = @transform_1, window_bounds = array<i64: 1, 64, 128>}, {pipeline_mode = #tpu.pipeline_mode<synchronous>, transform_indices = @transform_2, window_bounds = array<i64: 4, 128, 128>}, {pipeline_mode = #tpu.pipeline_mode<synchronous>, transform_indices = @transform_3, window_bounds = array<i64: 4, 1, 128>}, {pipeline_mode = #tpu.pipeline_mode<synchronous>, transform_indices = @transform_4, window_bounds = array<i64: 128, 128>}, {pipeline_mode = #tpu.pipeline_mode<synchronous>, transform_indices = @transform_5, window_bounds = array<i64: 1, 128>}, {transform_indices = @transform_6, window_bounds = array<i64: 1, 64, 128>}]} {
    %cst = arith.constant 0.000000e+00 : bf16
    %0 = vector.broadcast %cst : bf16 to vector<4x9x9x128xbf16>
    %c0 = arith.constant 0 : index
    %c0_0 = arith.constant 0 : index
    %c0_1 = arith.constant 0 : index
    %c0_2 = arith.constant 0 : index
    %1 = vector.load %arg8[%c0, %c0_0, %c0_1, %c0_2] : memref<4x9x9x128xbf16, #tpu.memory_space<vmem>>, vector<4x9x9x128xbf16>
    tpu.vector_store %arg8[%c0, %c0_0, %c0_1, %c0_2], %0 {strides = array<i32>} : memref<4x9x9x128xbf16, #tpu.memory_space<vmem>>, vector<4x9x9x128xbf16>,
    %c0_3 = arith.constant 0 : index
    %c0_4 = arith.constant 0 : index
    %c0_5 = arith.constant 0 : index
    %2 = vector.load %arg1[%c0_3, %c0_4, %c0_5] : memref<1x256x128xbf16, #tpu.memory_space<vmem>>, vector<1x64x128xbf16>
    %3 = vector.shape_cast %2 : vector<1x64x128xbf16> to vector<64x128xbf16>
    %c0_6 = arith.constant 0 : index
    %c0_7 = arith.constant 0 : index
    %c0_8 = arith.constant 0 : index
    %4 = vector.load %arg3[%c0_6, %c0_7, %c0_8] : memref<4x128x128xbf16, #tpu.memory_space<vmem>>, vector<1x128x128xbf16>
    %5 = vector.shape_cast %4 : vector<1x128x128xbf16> to vector<128x128xbf16>
    %cst_9 = arith.constant dense<0.000000e+00> : vector<64x128xf32>
    %6 = tpu.matmul %3, %5, %cst_9 {dimension_numbers = #tpu.dot_dimension_numbers<[1], [0], [0], [1], [0, 0, 1, 1], [], []>} : vector<64x128xbf16>, vector<128x128xbf16>, vector<64x128xf32> -> vector<64x128xf32>
    %c0_10 = arith.constant 0 : index
    %c0_11 = arith.constant 0 : index
    %c0_12 = arith.constant 0 : index
    %7 = vector.load %arg4[%c0_10, %c0_11, %c0_12] : memref<4x1x128xf32, #tpu.memory_space<vmem>>, vector<1x1x128xf32>
    %8 = vector.shape_cast %7 : vector<1x1x128xf32> to vector<1x128xf32>
    %9 = vector.broadcast %8 : vector<1x128xf32> to vector<64x128xf32>
    %10 = arith.addf %6, %9 : vector<64x128xf32>
    %cst_13 = arith.constant 0.000000e+00 : f32
    %11 = vector.broadcast %cst_13 : f32 to vector<64x128xf32>
    %12 = arith.maximumf %10, %11 : vector<64x128xf32>
    %13 = arith.truncf %12 : vector<64x128xf32> to vector<64x128xbf16>
    %14 = vector.shape_cast %13 : vector<64x128xbf16> to vector<8x8x128xbf16>
    %c3 = arith.constant 3 : index
    %c0_14 = arith.constant 0 : index
    %c0_15 = arith.constant 0 : index
    %c0_16 = arith.constant 0 : index
    %15 = vector.load %arg8[%c3, %c0_14, %c0_15, %c0_16] : memref<4x9x9x128xbf16, #tpu.memory_space<vmem>>, vector<1x8x8x128xbf16>
    %16 = vector.shape_cast %15 : vector<1x8x8x128xbf16> to vector<8x8x128xbf16>
    %17 = vector.shape_cast %14 : vector<8x8x128xbf16> to vector<1x8x8x128xbf16>
    tpu.vector_store %arg8[%c3, %c0_14, %c0_15, %c0_16], %17 {strides = array<i32>} : memref<4x9x9x128xbf16, #tpu.memory_space<vmem>>, vector<1x8x8x128xbf16>,
    %c0_17 = arith.constant 0 : index
    %c64 = arith.constant 64 : index
    %c0_18 = arith.constant 0 : index
    %18 = vector.load %arg1[%c0_17, %c64, %c0_18] : memref<1x256x128xbf16, #tpu.memory_space<vmem>>, vector<1x64x128xbf16>
    %19 = vector.shape_cast %18 : vector<1x64x128xbf16> to vector<64x128xbf16>
    %c1 = arith.constant 1 : index
    %c0_19 = arith.constant 0 : index
    %c0_20 = arith.constant 0 : index
    %20 = vector.load %arg3[%c1, %c0_19, %c0_20] : memref<4x128x128xbf16, #tpu.memory_space<vmem>>, vector<1x128x128xbf16>
    %21 = vector.shape_cast %20 : vector<1x128x128xbf16> to vector<128x128xbf16>
    %cst_21 = arith.constant dense<0.000000e+00> : vector<64x128xf32>
    %22 = tpu.matmul %19, %21, %cst_21 {dimension_numbers = #tpu.dot_dimension_numbers<[1], [0], [0], [1], [0, 0, 1, 1], [], []>} : vector<64x128xbf16>, vector<128x128xbf16>, vector<64x128xf32> -> vector<64x128xf32>
    %c1_22 = arith.constant 1 : index
    %c0_23 = arith.constant 0 : index
    %c0_24 = arith.constant 0 : index
    %23 = vector.load %arg4[%c1_22, %c0_23, %c0_24] : memref<4x1x128xf32, #tpu.memory_space<vmem>>, vector<1x1x128xf32>
    %24 = vector.shape_cast %23 : vector<1x1x128xf32> to vector<1x128xf32>
    %25 = vector.broadcast %24 : vector<1x128xf32> to vector<64x128xf32>
    %26 = arith.addf %22, %25 : vector<64x128xf32>
    %cst_25 = arith.constant 0.000000e+00 : f32
    %27 = vector.broadcast %cst_25 : f32 to vector<64x128xf32>
    %28 = arith.maximumf %26, %27 : vector<64x128xf32>
    %29 = arith.truncf %28 : vector<64x128xf32> to vector<64x128xbf16>
    %30 = vector.shape_cast %29 : vector<64x128xbf16> to vector<8x8x128xbf16>
    %c2 = arith.constant 2 : index
    %c0_26 = arith.constant 0 : index
    %c1_27 = arith.constant 1 : index
    %c0_28 = arith.constant 0 : index
    %31 = vector.load %arg8[%c2, %c0_26, %c1_27, %c0_28] : memref<4x9x9x128xbf16, #tpu.memory_space<vmem>>, vector<1x8x8x128xbf16>
    %32 = vector.shape_cast %31 : vector<1x8x8x128xbf16> to vector<8x8x128xbf16>
    %33 = vector.shape_cast %30 : vector<8x8x128xbf16> to vector<1x8x8x128xbf16>
    tpu.vector_store %arg8[%c2, %c0_26, %c1_27, %c0_28], %33 {strides = array<i32>} : memref<4x9x9x128xbf16, #tpu.memory_space<vmem>>, vector<1x8x8x128xbf16>,
    %c0_29 = arith.constant 0 : index
    %c128 = arith.constant 128 : index
    %c0_30 = arith.constant 0 : index
    %34 = vector.load %arg1[%c0_29, %c128, %c0_30] : memref<1x256x128xbf16, #tpu.memory_space<vmem>>, vector<1x64x128xbf16>
    %35 = vector.shape_cast %34 : vector<1x64x128xbf16> to vector<64x128xbf16>
    %c2_31 = arith.constant 2 : index
    %c0_32 = arith.constant 0 : index
    %c0_33 = arith.constant 0 : index
    %36 = vector.load %arg3[%c2_31, %c0_32, %c0_33] : memref<4x128x128xbf16, #tpu.memory_space<vmem>>, vector<1x128x128xbf16>
    %37 = vector.shape_cast %36 : vector<1x128x128xbf16> to vector<128x128xbf16>
    %cst_34 = arith.constant dense<0.000000e+00> : vector<64x128xf32>
    %38 = tpu.matmul %35, %37, %cst_34 {dimension_numbers = #tpu.dot_dimension_numbers<[1], [0], [0], [1], [0, 0, 1, 1], [], []>} : vector<64x128xbf16>, vector<128x128xbf16>, vector<64x128xf32> -> vector<64x128xf32>
    %c2_35 = arith.constant 2 : index
    %c0_36 = arith.constant 0 : index
    %c0_37 = arith.constant 0 : index
    %39 = vector.load %arg4[%c2_35, %c0_36, %c0_37] : memref<4x1x128xf32, #tpu.memory_space<vmem>>, vector<1x1x128xf32>
    %40 = vector.shape_cast %39 : vector<1x1x128xf32> to vector<1x128xf32>
    %41 = vector.broadcast %40 : vector<1x128xf32> to vector<64x128xf32>
    %42 = arith.addf %38, %41 : vector<64x128xf32>
    %cst_38 = arith.constant 0.000000e+00 : f32
    %43 = vector.broadcast %cst_38 : f32 to vector<64x128xf32>
    %44 = arith.maximumf %42, %43 : vector<64x128xf32>
    %45 = arith.truncf %44 : vector<64x128xf32> to vector<64x128xbf16>
    %46 = vector.shape_cast %45 : vector<64x128xbf16> to vector<8x8x128xbf16>
    %c1_39 = arith.constant 1 : index
    %c1_40 = arith.constant 1 : index
    %c0_41 = arith.constant 0 : index
    %c0_42 = arith.constant 0 : index
    %47 = vector.load %arg8[%c1_39, %c1_40, %c0_41, %c0_42] : memref<4x9x9x128xbf16, #tpu.memory_space<vmem>>, vector<1x8x8x128xbf16>
    %48 = vector.shape_cast %47 : vector<1x8x8x128xbf16> to vector<8x8x128xbf16>
    %49 = vector.shape_cast %46 : vector<8x8x128xbf16> to vector<1x8x8x128xbf16>
    tpu.vector_store %arg8[%c1_39, %c1_40, %c0_41, %c0_42], %49 {strides = array<i32>} : memref<4x9x9x128xbf16, #tpu.memory_space<vmem>>, vector<1x8x8x128xbf16>,
    %c0_43 = arith.constant 0 : index
    %c192 = arith.constant 192 : index
    %c0_44 = arith.constant 0 : index
    %50 = vector.load %arg1[%c0_43, %c192, %c0_44] : memref<1x256x128xbf16, #tpu.memory_space<vmem>>, vector<1x64x128xbf16>
    %51 = vector.shape_cast %50 : vector<1x64x128xbf16> to vector<64x128xbf16>
    %c3_45 = arith.constant 3 : index
    %c0_46 = arith.constant 0 : index
    %c0_47 = arith.constant 0 : index
    %52 = vector.load %arg3[%c3_45, %c0_46, %c0_47] : memref<4x128x128xbf16, #tpu.memory_space<vmem>>, vector<1x128x128xbf16>
    %53 = vector.shape_cast %52 : vector<1x128x128xbf16> to vector<128x128xbf16>
    %cst_48 = arith.constant dense<0.000000e+00> : vector<64x128xf32>
    %54 = tpu.matmul %51, %53, %cst_48 {dimension_numbers = #tpu.dot_dimension_numbers<[1], [0], [0], [1], [0, 0, 1, 1], [], []>} : vector<64x128xbf16>, vector<128x128xbf16>, vector<64x128xf32> -> vector<64x128xf32>
    %c3_49 = arith.constant 3 : index
    %c0_50 = arith.constant 0 : index
    %c0_51 = arith.constant 0 : index
    %55 = vector.load %arg4[%c3_49, %c0_50, %c0_51] : memref<4x1x128xf32, #tpu.memory_space<vmem>>, vector<1x1x128xf32>
    %56 = vector.shape_cast %55 : vector<1x1x128xf32> to vector<1x128xf32>
    %57 = vector.broadcast %56 : vector<1x128xf32> to vector<64x128xf32>
    %58 = arith.addf %54, %57 : vector<64x128xf32>
    %cst_52 = arith.constant 0.000000e+00 : f32
    %59 = vector.broadcast %cst_52 : f32 to vector<64x128xf32>
    %60 = arith.maximumf %58, %59 : vector<64x128xf32>
    %61 = arith.truncf %60 : vector<64x128xf32> to vector<64x128xbf16>
    %62 = vector.shape_cast %61 : vector<64x128xbf16> to vector<8x8x128xbf16>
    %c0_53 = arith.constant 0 : index
    %c1_54 = arith.constant 1 : index
    %c1_55 = arith.constant 1 : index
    %c0_56 = arith.constant 0 : index
    %63 = vector.load %arg8[%c0_53, %c1_54, %c1_55, %c0_56] : memref<4x9x9x128xbf16, #tpu.memory_space<vmem>>, vector<1x8x8x128xbf16>
    %64 = vector.shape_cast %63 : vector<1x8x8x128xbf16> to vector<8x8x128xbf16>
    %65 = vector.shape_cast %62 : vector<8x8x128xbf16> to vector<1x8x8x128xbf16>
    tpu.vector_store %arg8[%c0_53, %c1_54, %c1_55, %c0_56], %65 {strides = array<i32>} : memref<4x9x9x128xbf16, #tpu.memory_space<vmem>>, vector<1x8x8x128xbf16>,
    %66 = tpu.iota {dimensions = array<i32: 1>} : vector<64x128xi32>
    %c0_57 = arith.constant 0 : index
    %c0_58 = arith.constant 0 : index
    %c0_59 = arith.constant 0 : index
    %67 = vector.load %arg2[%c0_57, %c0_58, %c0_59] : memref<1x64x128xbf16, #tpu.memory_space<vmem>>, vector<1x64x128xbf16>
    %68 = vector.shape_cast %67 : vector<1x64x128xbf16> to vector<64x128xbf16>
    %c0_60 = arith.constant 0 : index
    %c0_61 = arith.constant 0 : index
    %c0_62 = arith.constant 0 : index
    %c0_63 = arith.constant 0 : index
    %69 = vector.load %arg8[%c0_60, %c0_61, %c0_62, %c0_63] : memref<4x9x9x128xbf16, #tpu.memory_space<vmem>>, vector<1x8x8x128xbf16>
    %70 = vector.shape_cast %69 : vector<1x8x8x128xbf16> to vector<8x8x128xbf16>
    %71 = vector.shape_cast %70 : vector<8x8x128xbf16> to vector<64x128xbf16>
    %c0_i32 = arith.constant 0 : i32
    %72 = vector.broadcast %c0_i32 : i32 to vector<64x128xi32>
    %73 = arith.cmpi sge, %66, %72 : vector<64x128xi32>
    %c8_i32 = arith.constant 8 : i32
    %74 = vector.broadcast %c8_i32 : i32 to vector<64x128xi32>
    %75 = arith.cmpi slt, %66, %74 : vector<64x128xi32>
    %76 = arith.andi %73, %75 : vector<64x128xi1>
    %cst_64 = arith.constant 0.000000e+00 : bf16
    %77 = vector.broadcast %cst_64 : bf16 to vector<64x128xbf16>
    %78 = arith.select %76, %71, %77 : vector<64x128xi1>, vector<64x128xbf16>
    %79 = arith.addf %68, %78 : vector<64x128xbf16>
    %c1_65 = arith.constant 1 : index
    %c0_66 = arith.constant 0 : index
    %c0_67 = arith.constant 0 : index
    %c0_68 = arith.constant 0 : index
    %80 = vector.load %arg8[%c1_65, %c0_66, %c0_67, %c0_68] : memref<4x9x9x128xbf16, #tpu.memory_space<vmem>>, vector<1x8x8x128xbf16>
    %81 = vector.shape_cast %80 : vector<1x8x8x128xbf16> to vector<8x8x128xbf16>
    %82 = vector.shape_cast %81 : vector<8x8x128xbf16> to vector<64x128xbf16>
    %c8_i32_69 = arith.constant 8 : i32
    %83 = vector.broadcast %c8_i32_69 : i32 to vector<64x128xi32>
    %84 = arith.cmpi sge, %66, %83 : vector<64x128xi32>
    %c16_i32 = arith.constant 16 : i32
    %85 = vector.broadcast %c16_i32 : i32 to vector<64x128xi32>
    %86 = arith.cmpi slt, %66, %85 : vector<64x128xi32>
    %87 = arith.andi %84, %86 : vector<64x128xi1>
    %cst_70 = arith.constant 0.000000e+00 : bf16
    %88 = vector.broadcast %cst_70 : bf16 to vector<64x128xbf16>
    %89 = arith.select %87, %82, %88 : vector<64x128xi1>, vector<64x128xbf16>
    %90 = arith.addf %79, %89 : vector<64x128xbf16>
    %c0_71 = arith.constant 0 : index
    %c0_72 = arith.constant 0 : index
    %c1_73 = arith.constant 1 : index
    %c0_74 = arith.constant 0 : index
    %91 = vector.load %arg8[%c0_71, %c0_72, %c1_73, %c0_74] : memref<4x9x9x128xbf16, #tpu.memory_space<vmem>>, vector<1x8x8x128xbf16>
    %92 = vector.shape_cast %91 : vector<1x8x8x128xbf16> to vector<8x8x128xbf16>
    %93 = vector.shape_cast %92 : vector<8x8x128xbf16> to vector<64x128xbf16>
    %c16_i32_75 = arith.constant 16 : i32
    %94 = vector.broadcast %c16_i32_75 : i32 to vector<64x128xi32>
    %95 = arith.cmpi sge, %66, %94 : vector<64x128xi32>
    %c24_i32 = arith.constant 24 : i32
    %96 = vector.broadcast %c24_i32 : i32 to vector<64x128xi32>
    %97 = arith.cmpi slt, %66, %96 : vector<64x128xi32>
    %98 = arith.andi %95, %97 : vector<64x128xi1>
    %cst_76 = arith.constant 0.000000e+00 : bf16
    %99 = vector.broadcast %cst_76 : bf16 to vector<64x128xbf16>
    %100 = arith.select %98, %93, %99 : vector<64x128xi1>, vector<64x128xbf16>
    %101 = arith.addf %90, %100 : vector<64x128xbf16>
    %c2_77 = arith.constant 2 : index
    %c0_78 = arith.constant 0 : index
    %c0_79 = arith.constant 0 : index
    %c0_80 = arith.constant 0 : index
    %102 = vector.load %arg8[%c2_77, %c0_78, %c0_79, %c0_80] : memref<4x9x9x128xbf16, #tpu.memory_space<vmem>>, vector<1x8x8x128xbf16>
    %103 = vector.shape_cast %102 : vector<1x8x8x128xbf16> to vector<8x8x128xbf16>
    %104 = vector.shape_cast %103 : vector<8x8x128xbf16> to vector<64x128xbf16>
    %c24_i32_81 = arith.constant 24 : i32
    %105 = vector.broadcast %c24_i32_81 : i32 to vector<64x128xi32>
    %106 = arith.cmpi sge, %66, %105 : vector<64x128xi32>
    %c32_i32 = arith.constant 32 : i32
    %107 = vector.broadcast %c32_i32 : i32 to vector<64x128xi32>
    %108 = arith.cmpi slt, %66, %107 : vector<64x128xi32>
    %109 = arith.andi %106, %108 : vector<64x128xi1>
    %cst_82 = arith.constant 0.000000e+00 : bf16
    %110 = vector.broadcast %cst_82 : bf16 to vector<64x128xbf16>
    %111 = arith.select %109, %104, %110 : vector<64x128xi1>, vector<64x128xbf16>
    %112 = arith.addf %101, %111 : vector<64x128xbf16>
    %c3_83 = arith.constant 3 : index
    %c0_84 = arith.constant 0 : index
    %c0_85 = arith.constant 0 : index
    %c0_86 = arith.constant 0 : index
    %113 = vector.load %arg8[%c3_83, %c0_84, %c0_85, %c0_86] : memref<4x9x9x128xbf16, #tpu.memory_space<vmem>>, vector<1x8x8x128xbf16>
    %114 = vector.shape_cast %113 : vector<1x8x8x128xbf16> to vector<8x8x128xbf16>
    %115 = vector.shape_cast %114 : vector<8x8x128xbf16> to vector<64x128xbf16>
    %c32_i32_87 = arith.constant 32 : i32
    %116 = vector.broadcast %c32_i32_87 : i32 to vector<64x128xi32>
    %117 = arith.cmpi sge, %66, %116 : vector<64x128xi32>
    %c40_i32 = arith.constant 40 : i32
    %118 = vector.broadcast %c40_i32 : i32 to vector<64x128xi32>
    %119 = arith.cmpi slt, %66, %118 : vector<64x128xi32>
    %120 = arith.andi %117, %119 : vector<64x128xi1>
    %cst_88 = arith.constant 0.000000e+00 : bf16
    %121 = vector.broadcast %cst_88 : bf16 to vector<64x128xbf16>
    %122 = arith.select %120, %115, %121 : vector<64x128xi1>, vector<64x128xbf16>
    %123 = arith.addf %112, %122 : vector<64x128xbf16>
    %c2_89 = arith.constant 2 : index
    %c0_90 = arith.constant 0 : index
    %c1_91 = arith.constant 1 : index
    %c0_92 = arith.constant 0 : index
    %124 = vector.load %arg8[%c2_89, %c0_90, %c1_91, %c0_92] : memref<4x9x9x128xbf16, #tpu.memory_space<vmem>>, vector<1x8x8x128xbf16>
    %125 = vector.shape_cast %124 : vector<1x8x8x128xbf16> to vector<8x8x128xbf16>
    %126 = vector.shape_cast %125 : vector<8x8x128xbf16> to vector<64x128xbf16>
    %c40_i32_93 = arith.constant 40 : i32
    %127 = vector.broadcast %c40_i32_93 : i32 to vector<64x128xi32>
    %128 = arith.cmpi sge, %66, %127 : vector<64x128xi32>
    %c48_i32 = arith.constant 48 : i32
    %129 = vector.broadcast %c48_i32 : i32 to vector<64x128xi32>
    %130 = arith.cmpi slt, %66, %129 : vector<64x128xi32>
    %131 = arith.andi %128, %130 : vector<64x128xi1>
    %cst_94 = arith.constant 0.000000e+00 : bf16
    %132 = vector.broadcast %cst_94 : bf16 to vector<64x128xbf16>
    %133 = arith.select %131, %126, %132 : vector<64x128xi1>, vector<64x128xbf16>
    %134 = arith.addf %123, %133 : vector<64x128xbf16>
    %c0_95 = arith.constant 0 : index
    %c1_96 = arith.constant 1 : index
    %c0_97 = arith.constant 0 : index
    %c0_98 = arith.constant 0 : index
    %135 = vector.load %arg8[%c0_95, %c1_96, %c0_97, %c0_98] : memref<4x9x9x128xbf16, #tpu.memory_space<vmem>>, vector<1x8x8x128xbf16>
    %136 = vector.shape_cast %135 : vector<1x8x8x128xbf16> to vector<8x8x128xbf16>
    %137 = vector.shape_cast %136 : vector<8x8x128xbf16> to vector<64x128xbf16>
    %c48_i32_99 = arith.constant 48 : i32
    %138 = vector.broadcast %c48_i32_99 : i32 to vector<64x128xi32>
    %139 = arith.cmpi sge, %66, %138 : vector<64x128xi32>
    %c56_i32 = arith.constant 56 : i32
    %140 = vector.broadcast %c56_i32 : i32 to vector<64x128xi32>
    %141 = arith.cmpi slt, %66, %140 : vector<64x128xi32>
    %142 = arith.andi %139, %141 : vector<64x128xi1>
    %cst_100 = arith.constant 0.000000e+00 : bf16
    %143 = vector.broadcast %cst_100 : bf16 to vector<64x128xbf16>
    %144 = arith.select %142, %137, %143 : vector<64x128xi1>, vector<64x128xbf16>
    %145 = arith.addf %134, %144 : vector<64x128xbf16>
    %c1_101 = arith.constant 1 : index
    %c1_102 = arith.constant 1 : index
    %c0_103 = arith.constant 0 : index
    %c0_104 = arith.constant 0 : index
    %146 = vector.load %arg8[%c1_101, %c1_102, %c0_103, %c0_104] : memref<4x9x9x128xbf16, #tpu.memory_space<vmem>>, vector<1x8x8x128xbf16>
    %147 = vector.shape_cast %146 : vector<1x8x8x128xbf16> to vector<8x8x128xbf16>
    %148 = vector.shape_cast %147 : vector<8x8x128xbf16> to vector<64x128xbf16>
    %c56_i32_105 = arith.constant 56 : i32
    %149 = vector.broadcast %c56_i32_105 : i32 to vector<64x128xi32>
    %150 = arith.cmpi sge, %66, %149 : vector<64x128xi32>
    %c64_i32 = arith.constant 64 : i32
    %151 = vector.broadcast %c64_i32 : i32 to vector<64x128xi32>
    %152 = arith.cmpi slt, %66, %151 : vector<64x128xi32>
    %153 = arith.andi %150, %152 : vector<64x128xi1>
    %cst_106 = arith.constant 0.000000e+00 : bf16
    %154 = vector.broadcast %cst_106 : bf16 to vector<64x128xbf16>
    %155 = arith.select %153, %148, %154 : vector<64x128xi1>, vector<64x128xbf16>
    %156 = arith.addf %145, %155 : vector<64x128xbf16>
    %c0_107 = arith.constant 0 : index
    %c1_108 = arith.constant 1 : index
    %c1_109 = arith.constant 1 : index
    %c0_110 = arith.constant 0 : index
    %157 = vector.load %arg8[%c0_107, %c1_108, %c1_109, %c0_110] : memref<4x9x9x128xbf16, #tpu.memory_space<vmem>>, vector<1x8x8x128xbf16>
    %158 = vector.shape_cast %157 : vector<1x8x8x128xbf16> to vector<8x8x128xbf16>
    %159 = vector.shape_cast %158 : vector<8x8x128xbf16> to vector<64x128xbf16>
    %c64_i32_111 = arith.constant 64 : i32
    %160 = vector.broadcast %c64_i32_111 : i32 to vector<64x128xi32>
    %161 = arith.cmpi sge, %66, %160 : vector<64x128xi32>
    %c72_i32 = arith.constant 72 : i32
    %162 = vector.broadcast %c72_i32 : i32 to vector<64x128xi32>
    %163 = arith.cmpi slt, %66, %162 : vector<64x128xi32>
    %164 = arith.andi %161, %163 : vector<64x128xi1>
    %cst_112 = arith.constant 0.000000e+00 : bf16
    %165 = vector.broadcast %cst_112 : bf16 to vector<64x128xbf16>
    %166 = arith.select %164, %159, %165 : vector<64x128xi1>, vector<64x128xbf16>
    %167 = arith.addf %156, %166 : vector<64x128xbf16>
    %c0_113 = arith.constant 0 : index
    %c0_114 = arith.constant 0 : index
    %168 = vector.load %arg5[%c0_113, %c0_114] : memref<128x128xbf16, #tpu.memory_space<vmem>>, vector<128x128xbf16>
    %cst_115 = arith.constant dense<0.000000e+00> : vector<64x128xf32>
    %169 = tpu.matmul %167, %168, %cst_115 {dimension_numbers = #tpu.dot_dimension_numbers<[1], [0], [0], [1], [0, 0, 1, 1], [], []>} : vector<64x128xbf16>, vector<128x128xbf16>, vector<64x128xf32> -> vector<64x128xf32>
    %c0_116 = arith.constant 0 : index
    %c0_117 = arith.constant 0 : index
    %170 = vector.load %arg6[%c0_116, %c0_117] : memref<1x128xf32, #tpu.memory_space<vmem>>, vector<1x128xf32>
    %171 = vector.broadcast %170 : vector<1x128xf32> to vector<64x128xf32>
    %172 = arith.addf %169, %171 : vector<64x128xf32>
    %cst_118 = arith.constant 0.000000e+00 : f32
    %173 = vector.broadcast %cst_118 : f32 to vector<64x128xf32>
    %174 = arith.maximumf %172, %173 : vector<64x128xf32>
    %c0_119 = arith.constant 0 : index
    %c0_120 = arith.constant 0 : index
    %c0_121 = arith.constant 0 : index
    %175 = vector.load %arg7[%c0_119, %c0_120, %c0_121] : memref<1x64x128xf32, #tpu.memory_space<vmem>>, vector<1x64x128xf32>
    %176 = vector.shape_cast %175 : vector<1x64x128xf32> to vector<64x128xf32>
    %177 = vector.shape_cast %174 : vector<64x128xf32> to vector<1x64x128xf32>
    tpu.vector_store %arg7[%c0_119, %c0_120, %c0_121], %177 {strides = array<i32>} : memref<1x64x128xf32, #tpu.memory_space<vmem>>, vector<1x64x128xf32>,
    return
  }
  func.func @transform_0(%arg0: i32) -> (i32, i32, i32) {
    %c0_i32 = arith.constant 0 : i32
    %c0_i32_0 = arith.constant 0 : i32
    %c0_i32_1 = arith.constant 0 : i32
    return %arg0, %c0_i32, %c0_i32_0 : i32, i32, i32
  }
  func.func @transform_1(%arg0: i32) -> (i32, i32, i32) {
    %c0_i32 = arith.constant 0 : i32
    %c0_i32_0 = arith.constant 0 : i32
    %c0_i32_1 = arith.constant 0 : i32
    return %arg0, %c0_i32, %c0_i32_0 : i32, i32, i32
  }
  func.func @transform_2(%arg0: i32) -> (i32, i32, i32) {
    %c0_i32 = arith.constant 0 : i32
    %c0_i32_0 = arith.constant 0 : i32
    %c0_i32_1 = arith.constant 0 : i32
    %c0_i32_2 = arith.constant 0 : i32
    return %c0_i32, %c0_i32_0, %c0_i32_1 : i32, i32, i32
  }
  func.func @transform_3(%arg0: i32) -> (i32, i32, i32) {
    %c0_i32 = arith.constant 0 : i32
    %c0_i32_0 = arith.constant 0 : i32
    %c0_i32_1 = arith.constant 0 : i32
    %c0_i32_2 = arith.constant 0 : i32
    return %c0_i32, %c0_i32_0, %c0_i32_1 : i32, i32, i32
  }
  func.func @transform_4(%arg0: i32) -> (i32, i32) {
    %c0_i32 = arith.constant 0 : i32
    %c0_i32_0 = arith.constant 0 : i32
    %c0_i32_1 = arith.constant 0 : i32
    return %c0_i32, %c0_i32_0 : i32, i32
  }
  func.func @transform_5(%arg0: i32) -> (i32, i32) {
    %c0_i32 = arith.constant 0 : i32
    %c0_i32_0 = arith.constant 0 : i32
    %c0_i32_1 = arith.constant 0 : i32
    return %c0_i32, %c0_i32_0 : i32, i32
  }
  func.func @transform_6(%arg0: i32) -> (i32, i32, i32) {
    %c0_i32 = arith.constant 0 : i32
    %c0_i32_0 = arith.constant 0 : i32
    %c0_i32_1 = arith.constant 0 : i32
    return %arg0, %c0_i32, %c0_i32_0 : i32, i32, i32
  }
}

</mosaic_0001>

<llo_original>
// kernel: basic_block_forward.1
$region0: #{basic_block_forward.1}
  #allocation0 [shape = 'u32[]', space=smem, size = 0x4, offset = 0x4, fixed_abs, tag = 'smem constant byte address 0x4 - core index']
  #allocation1 [shape = 'u32[144,128]{1,0:T(1,128)}', space=vmem, size = 0x12000, scoped, tag = 'internal scratch']
  #allocation2 [shape = 'bf16[4,9,9,128]{3,2,1,0:T(8,128)(2,1)}', space=vmem, size = 0x24000, scoped, tag = 'scratch operand']
  %s0 = inlined_call_operand.vmem [shape: bf16[2,256,128], index: 0, kind: input, shape index: {}]
  %s1 = inlined_call_operand.vmem [shape: bf16[2,64,128], index: 1, kind: input, shape index: {}]
  %s2 = inlined_call_operand.vmem [shape: bf16[4,128,128], index: 2, kind: input, shape index: {}]
  %s3 = inlined_call_operand.vmem [shape: f32[4,1,128], index: 3, kind: input, shape index: {}]
  %s4 = inlined_call_operand.vmem [shape: bf16[128,128], index: 4, kind: input, shape index: {}]
  %s5 = inlined_call_operand.vmem [shape: f32[1,128], index: 5, kind: input, shape index: {}]
  %s6 = inlined_call_operand.vmem [shape: f32[2,64,128], index: 6, kind: output, shape index: {}]
  %s7 = sld [smem:[#allocation0]]
  $region57: #{basic_block_forward.1} parent=0
    _
  %s9 = ssub.s32 1, %s7
  %s10 = scalar_select 0, %s9, %s7
  loop: start=0, step=1, limit=4
  $region2: #{basic_block_forward.1} parent=0 // loop_pre_header
    _
  $region3: #{basic_block_forward.1} parent=0 // loop_header
    %s12 = sphi 0, %s16
    %p13 = scmp.ge.s32.totalorder %s12, 4
    %s22 = sphi 0, %s24
    %s25 = sphi 0, %s22
    %s26 = sphi 0, %s25
    %s42 = sphi 0, %s26
    %s48 = sphi 0, %s50
    %s51 = sphi 0, %s48
    %s52 = sphi 0, %s51
    %s68 = sphi 0, %s52
    %s72 = sphi 0, %s72
    %s74 = sphi 0, %s72
    %s75 = sphi 0, %s74
    %s89 = sphi 0, %s75
    %s93 = sphi 0, %s93
    %s95 = sphi 0, %s93
    %s96 = sphi 0, %s95
    %s110 = sphi 0, %s96
    %s114 = sphi 0, %s114
    %s116 = sphi 0, %s114
    %s117 = sphi 0, %s116
    %s131 = sphi 0, %s117
    %s135 = sphi 0, %s135
    %s137 = sphi 0, %s135
    %s138 = sphi 0, %s137
    %s152 = sphi 0, %s138
    %s158 = sphi 0, %s160
    %s161 = sphi 0, %s158
    %s162 = sphi 0, %s161
    %s178 = sphi 0, %s162
  $region4: #{basic_block_forward.1} parent=0 // loop_header_branch
    %15 = sbr.rel (%p13) target = $region8
  $region5: #{basic_block_forward.1} parent=0 // loop_body
    %s17 = ssub.s32 %s12, 1
    %s18 = ssub.s32 %s12, 2
    %s19 = sadd.s32 %s12, 1
    %s20 = ssub.s32 %s12, %s19
    %p21 = scmp.eq.s32.totalorder %s20, 0
    %s23 = sadd.s32 %s22, 1
    %s24 = scalar_select %p21, %s22, %s23
    %p27 = pneg %p21
    %p28 = scmp.eq.s32.totalorder %s12, 1
    %p29 = por %p27, %p28
    %p30 = scmp.ne.s32.totalorder %s22, %s25
    %p31 = scmp.eq.s32.totalorder %s12, 0
    %p32 = por %p30, %p31
    %p33 = scmp.ne.s32.totalorder %s22, %s25
    %p34 = scmp.eq.s32.totalorder %s17, 1
    %p35 = por %p33, %p34
    %p36 = scmp.ne.s32.totalorder %s25, %s26
    %p37 = scmp.eq.s32.totalorder %s17, 0
    %p38 = por %p36, %p37
    %p39 = scmp.ne.s32.totalorder %s25, %s26
    %p40 = scmp.eq.s32.totalorder %s18, 1
    %p41 = por %p39, %p40
    %p43 = scmp.ne.s32.totalorder %s26, %s42
    %p44 = scmp.eq.s32.totalorder %s18, 0
    %p45 = por %p43, %p44
    %s46 = ssub.s32 %s12, %s19
    %p47 = scmp.eq.s32.totalorder %s46, 0
    %s49 = sadd.s32 %s48, 1
    %s50 = scalar_select %p47, %s48, %s49
    %p53 = pneg %p47
    %p54 = scmp.eq.s32.totalorder %s12, 1
    %p55 = por %p53, %p54
    %p56 = scmp.ne.s32.totalorder %s48, %s51
    %p57 = scmp.eq.s32.totalorder %s12, 0
    %p58 = por %p56, %p57
    %p59 = scmp.ne.s32.totalorder %s48, %s51
    %p60 = scmp.eq.s32.totalorder %s17, 1
    %p61 = por %p59, %p60
    %p62 = scmp.ne.s32.totalorder %s51, %s52
    %p63 = scmp.eq.s32.totalorder %s17, 0
    %p64 = por %p62, %p63
    %p65 = scmp.ne.s32.totalorder %s51, %s52
    %p66 = scmp.eq.s32.totalorder %s18, 1
    %p67 = por %p65, %p66
    %p69 = scmp.ne.s32.totalorder %s52, %s68
    %p70 = scmp.eq.s32.totalorder %s18, 0
    %p71 = por %p69, %p70
    %s73 = sadd.s32 %s72, 1
    %p76 = scmp.eq.s32.totalorder %s12, 1
    %p77 = scmp.ne.s32.totalorder %s72, %s74
    %p78 = scmp.eq.s32.totalorder %s12, 0
    %p79 = por %p77, %p78
    %p80 = scmp.ne.s32.totalorder %s72, %s74
    %p81 = scmp.eq.s32.totalorder %s17, 1
    %p82 = por %p80, %p81
    %p83 = scmp.ne.s32.totalorder %s74, %s75
    %p84 = scmp.eq.s32.totalorder %s17, 0
    %p85 = por %p83, %p84
    %p86 = scmp.ne.s32.totalorder %s74, %s75
    %p87 = scmp.eq.s32.totalorder %s18, 1
    %p88 = por %p86, %p87
    %p90 = scmp.ne.s32.totalorder %s75, %s89
    %p91 = scmp.eq.s32.totalorder %s18, 0
    %p92 = por %p90, %p91
    %s94 = sadd.s32 %s93, 1
    %p97 = scmp.eq.s32.totalorder %s12, 1
    %p98 = scmp.ne.s32.totalorder %s93, %s95
    %p99 = scmp.eq.s32.totalorder %s12, 0
    %p100 = por %p98, %p99
    %p101 = scmp.ne.s32.totalorder %s93, %s95
    %p102 = scmp.eq.s32.totalorder %s17, 1
    %p103 = por %p101, %p102
    %p104 = scmp.ne.s32.totalorder %s95, %s96
    %p105 = scmp.eq.s32.totalorder %s17, 0
    %p106 = por %p104, %p105
    %p107 = scmp.ne.s32.totalorder %s95, %s96
    %p108 = scmp.eq.s32.totalorder %s18, 1
    %p109 = por %p107, %p108
    %p111 = scmp.ne.s32.totalorder %s96, %s110
    %p112 = scmp.eq.s32.totalorder %s18, 0
    %p113 = por %p111, %p112
    %s115 = sadd.s32 %s114, 1
    %p118 = scmp.eq.s32.totalorder %s12, 1
    %p119 = scmp.ne.s32.totalorder %s114, %s116
    %p120 = scmp.eq.s32.totalorder %s12, 0
    %p121 = por %p119, %p120
    %p122 = scmp.ne.s32.totalorder %s114, %s116
    %p123 = scmp.eq.s32.totalorder %s17, 1
    %p124 = por %p122, %p123
    %p125 = scmp.ne.s32.totalorder %s116, %s117
    %p126 = scmp.eq.s32.totalorder %s17, 0
    %p127 = por %p125, %p126
    %p128 = scmp.ne.s32.totalorder %s116, %s117
    %p129 = scmp.eq.s32.totalorder %s18, 1
    %p130 = por %p128, %p129
    %p132 = scmp.ne.s32.totalorder %s117, %s131
    %p133 = scmp.eq.s32.totalorder %s18, 0
    %p134 = por %p132, %p133
    %s136 = sadd.s32 %s135, 1
    %p139 = scmp.eq.s32.totalorder %s12, 1
    %p140 = scmp.ne.s32.totalorder %s135, %s137
    %p141 = scmp.eq.s32.totalorder %s12, 0
    %p142 = por %p140, %p141
    %p143 = scmp.ne.s32.totalorder %s135, %s137
    %p144 = scmp.eq.s32.totalorder %s17, 1
    %p145 = por %p143, %p144
    %p146 = scmp.ne.s32.totalorder %s137, %s138
    %p147 = scmp.eq.s32.totalorder %s17, 0
    %p148 = por %p146, %p147
    %p149 = scmp.ne.s32.totalorder %s137, %s138
    %p150 = scmp.eq.s32.totalorder %s18, 1
    %p151 = por %p149, %p150
    %p153 = scmp.ne.s32.totalorder %s138, %s152
    %p154 = scmp.eq.s32.totalorder %s18, 0
    %p155 = por %p153, %p154
    %s156 = ssub.s32 %s12, %s19
    %p157 = scmp.eq.s32.totalorder %s156, 0
    %s159 = sadd.s32 %s158, 1
    %s160 = scalar_select %p157, %s158, %s159
    %p163 = pneg %p157
    %p164 = scmp.eq.s32.totalorder %s12, 1
    %p165 = por %p163, %p164
    %p166 = scmp.ne.s32.totalorder %s158, %s161
    %p167 = scmp.eq.s32.totalorder %s12, 0
    %p168 = por %p166, %p167
    %p169 = scmp.ne.s32.totalorder %s158, %s161
    %p170 = scmp.eq.s32.totalorder %s17, 1
    %p171 = por %p169, %p170
    %p172 = scmp.ne.s32.totalorder %s161, %s162
    %p173 = scmp.eq.s32.totalorder %s17, 0
    %p174 = por %p172, %p173
    %p175 = scmp.ne.s32.totalorder %s161, %s162
    %p176 = scmp.eq.s32.totalorder %s18, 1
    %p177 = por %p175, %p176
    %p179 = scmp.ne.s32.totalorder %s162, %s178
    %p180 = scmp.eq.s32.totalorder %s18, 0
    %p181 = por %p179, %p180
    %p182 = scmp.le.s32.totalorder 1, %s12
    %p183 = scmp.lt.s32.totalorder %s12, 3
    %p184 = pnand %p182, %p183
    %p185 = pneg %p184
    // Predicated region
    $region9: #{basic_block_forward.1} parent=5 // pred_check
      _
    $region10: #{basic_block_forward.1} parent=5 // pred_check_branch
      %187 = sbr.rel (%p184) target = $region12
    $region11: #{basic_block_forward.1} parent=5 // pred_region
      %s188 = ssub.s32 %s12, 1
      // Predicated region
      $region13: #{basic_block_forward.1} parent=11 // pred_check
        %p189 = pneg %p85
      $region14: #{basic_block_forward.1} parent=11 // pred_check_branch
        %191 = sbr.rel (%p189) target = $region16
      $region15: #{basic_block_forward.1} parent=11 // pred_region
        _
      $region16: #{basic_block_forward.1} parent=11 // pred_fallthru
        _
      // Predicated region
      $region17: #{basic_block_forward.1} parent=11 // pred_check
        %p192 = pneg %p106
      $region18: #{basic_block_forward.1} parent=11 // pred_check_branch
        %194 = sbr.rel (%p192) target = $region20
      $region19: #{basic_block_forward.1} parent=11 // pred_region
        _
      $region20: #{basic_block_forward.1} parent=11 // pred_fallthru
        _
      // Predicated region
      $region21: #{basic_block_forward.1} parent=11 // pred_check
        %p195 = pneg %p127
      $region22: #{basic_block_forward.1} parent=11 // pred_check_branch
        %197 = sbr.rel (%p195) target = $region24
      $region23: #{basic_block_forward.1} parent=11 // pred_region
        _
      $region24: #{basic_block_forward.1} parent=11 // pred_fallthru
        _
      // Predicated region
      $region25: #{basic_block_forward.1} parent=11 // pred_check
        %p198 = pneg %p148
      $region26: #{basic_block_forward.1} parent=11 // pred_check_branch
        %200 = sbr.rel (%p198) target = $region28
      $region27: #{basic_block_forward.1} parent=11 // pred_region
        _
      $region28: #{basic_block_forward.1} parent=11 // pred_fallthru
        _
    $region12: #{basic_block_forward.1} parent=5 // pred_fallthru
      _
    %p201 = scmp.lt.s32.totalorder %s12, 2
    // Predicated region
    $region29: #{basic_block_forward.1} parent=5 // pred_check
      %p202 = pneg %p201
    $region30: #{basic_block_forward.1} parent=5 // pred_check_branch
      %204 = sbr.rel (%p202) target = $region32
    $region31: #{basic_block_forward.1} parent=5 // pred_region
      // Predicated region
      $region33: #{basic_block_forward.1} parent=31 // pred_check
        %p205 = pneg %p32
      $region34: #{basic_block_forward.1} parent=31 // pred_check_branch
        %207 = sbr.rel (%p205) target = $region36
      $region35: #{basic_block_forward.1} parent=31 // pred_region
        %p208 = scmp.lt.s32.totalorder %s12, 1
        %s209 = scalar_select %p208, %s12, 1
        %s210 = smul.addr %s209, 32
        %s211 = smul.addr %s210, 4
        %s212 = scalar_lea.vmem %s0, %s211
      $region36: #{basic_block_forward.1} parent=31 // pred_fallthru
        _
      // Predicated region
      $region37: #{basic_block_forward.1} parent=31 // pred_check
        %p213 = pneg %p58
      $region38: #{basic_block_forward.1} parent=31 // pred_check_branch
        %215 = sbr.rel (%p213) target = $region40
      $region39: #{basic_block_forward.1} parent=31 // pred_region
        %p216 = scmp.lt.s32.totalorder %s12, 1
        %s217 = scalar_select %p216, %s12, 1
        %s218 = smul.addr %s217, 8
        %s219 = smul.addr %s218, 4
        %s220 = scalar_lea.vmem %s1, %s219
      $region40: #{basic_block_forward.1} parent=31 // pred_fallthru
        _
    $region32: #{basic_block_forward.1} parent=5 // pred_fallthru
      _
    %p221 = scmp.le.s32.totalorder 1, %s12
    %p222 = scmp.lt.s32.totalorder %s12, 3
    %p223 = pnand %p221, %p222
    %p224 = pneg %p223
    // Predicated region
    $region41: #{basic_block_forward.1} parent=5 // pred_check
      _
    $region42: #{basic_block_forward.1} parent=5 // pred_check_branch
      %226 = sbr.rel (%p223) target = $region44
    $region43: #{basic_block_forward.1} parent=5 // pred_region
      %s227 = ssub.s32 %s12, 1
      %p228 = scmp.lt.s32.totalorder %s17, 1
      %s229 = scalar_select %p228, %s17, 1
      %s230 = smul.addr %s229, 32
      %s231 = smul.addr %s230, 4
      %s232 = scalar_lea.vmem %s0, %s231
      %p233 = pneg %p38
      %p234 = pneg %p35
      %p235 = scmp.lt.s32.totalorder %s17, 1
      %s236 = scalar_select %p235, %s17, 1
      %s237 = smul.addr %s236, 8
      %s238 = smul.addr %s237, 4
      %s239 = scalar_lea.vmem %s1, %s238
      %p240 = pneg %p64
      %p241 = pneg %p61
      %p242 = pneg %p85
      %p243 = pneg %p82
      %p244 = pneg %p106
      %p245 = pneg %p103
      %p246 = pneg %p127
      %p247 = pneg %p124
      %p248 = pneg %p148
      %p249 = pneg %p145
      %p250 = pneg %p174
      %p251 = pneg %p171
      %p252 = scmp.lt.s32.totalorder %s17, 1
      %s253 = scalar_select %p252, %s17, 1
      %s254 = smul.addr %s253, 8
      %s255 = smul.addr %s254, 8
      %s256 = scalar_lea.vmem %s6, %s255
      %p257 = scmp.lt.s32.totalorder %s17, 1
      %s258 = scalar_select %p257, %s17, 1
      %s259 = smul.addr %s258, 32
      %s260 = smul.addr %s259, 4
      %s261 = scalar_lea.vmem %s0, %s260
      %p262 = scmp.lt.s32.totalorder %s17, 1
      %s263 = scalar_select %p262, %s17, 1
      %s264 = smul.addr %s263, 8
      %s265 = smul.addr %s264, 4
      %s266 = scalar_lea.vmem %s1, %s265
      %p267 = scmp.lt.s32.totalorder %s17, 1
      %s268 = scalar_select %p267, %s17, 1
      %s269 = smul.addr %s268, 8
      %s270 = smul.addr %s269, 8
      %s271 = scalar_lea.vmem %s6, %s270
      %273 = vst [vmem:[#allocation2] sm:$0xf] 0
      %vm274 = vcmask 1040384
      %vm275 = vsmask.f32 256
      %vm276 = vmand %vm274, %vm275
      %v277 = vld [vmem:[#allocation2 + $0x4] sm:$0x1]
      %v278 = vsel %vm276, 0, %v277
      %279 = vst [vmem:[#allocation2 + $0x4] sm:$0x1] %v278
      %280 = vst [vmem:[#allocation2 + $0x8] sm:$0xf] 0
      %v281 = vld [vmem:[#allocation2 + $0xc] sm:$0x1]
      %v282 = vsel %vm276, 0, %v281
      %283 = vst [vmem:[#allocation2 + $0xc] sm:$0x1] %v282
      %284 = vst [vmem:[#allocation2 + $0x10] sm:$0xf] 0
      %v285 = vld [vmem:[#allocation2 + $0x14] sm:$0x1]
      %v286 = vsel %vm276, 0, %v285
      %287 = vst [vmem:[#allocation2 + $0x14] sm:$0x1] %v286
      %288 = vst [vmem:[#allocation2 + $0x18] sm:$0xf] 0
      %v289 = vld [vmem:[#allocation2 + $0x1c] sm:$0x1]
      %v290 = vsel %vm276, 0, %v289
      %291 = vst [vmem:[#allocation2 + $0x1c] sm:$0x1] %v290
      %292 = vst [vmem:[#allocation2 + $0x20] sm:$0xf] 0
      %v293 = vld [vmem:[#allocation2 + $0x24] sm:$0x1]
      %v294 = vsel %vm276, 0, %v293
      %295 = vst [vmem:[#allocation2 + $0x24] sm:$0x1] %v294
      %296 = vst [vmem:[#allocation2 + $0x28] sm:$0xf] 0
      %v297 = vld [vmem:[#allocation2 + $0x2c] sm:$0x1]
      %v298 = vsel %vm276, 0, %v297
      %299 = vst [vmem:[#allocation2 + $0x2c] sm:$0x1] %v298
      %300 = vst [vmem:[#allocation2 + $0x30] sm:$0xf] 0
      %v301 = vld [vmem:[#allocation2 + $0x34] sm:$0x1]
      %v302 = vsel %vm276, 0, %v301
      %303 = vst [vmem:[#allocation2 + $0x34] sm:$0x1] %v302
      %304 = vst [vmem:[#allocation2 + $0x38] sm:$0xf] 0
      %v305 = vld [vmem:[#allocation2 + $0x3c] sm:$0x1]
      %v306 = vsel %vm276, 0, %v305
      %307 = vst [vmem:[#allocation2 + $0x3c] sm:$0x1] %v306
      %308 = vst [vmem:[#allocation2 + $0x40] sm:$0xf] 0
      %v309 = vld [vmem:[#allocation2 + $0x44] sm:$0x1]
      %v310 = vsel %vm276, 0, %v309
      %311 = vst [vmem:[#allocation2 + $0x44] sm:$0x1] %v310
      %312 = vst [vmem:[#allocation2 + $0x48] sm:$0xf] 0
      %v313 = vld [vmem:[#allocation2 + $0x4c] sm:$0x1]
      %v314 = vsel %vm276, 0, %v313
      %315 = vst [vmem:[#allocation2 + $0x4c] sm:$0x1] %v314
      %316 = vst [vmem:[#allocation2 + $0x50] sm:$0xf] 0
      %v317 = vld [vmem:[#allocation2 + $0x54] sm:$0x1]
      %v318 = vsel %vm276, 0, %v317
      %319 = vst [vmem:[#allocation2 + $0x54] sm:$0x1] %v318
      %320 = vst [vmem:[#allocation2 + $0x58] sm:$0xf] 0
      %v321 = vld [vmem:[#allocation2 + $0x5c] sm:$0x1]
      %v322 = vsel %vm276, 0, %v321
      %323 = vst [vmem:[#allocation2 + $0x5c] sm:$0x1] %v322
      %324 = vst [vmem:[#allocation2 + $0x60] sm:$0xf] 0
      %v325 = vld [vmem:[#allocation2 + $0x64] sm:$0x1]
      %v326 = vsel %vm276, 0, %v325
      %327 = vst [vmem:[#allocation2 + $0x64] sm:$0x1] %v326
      %328 = vst [vmem:[#allocation2 + $0x68] sm:$0xf] 0
      %v329 = vld [vmem:[#allocation2 + $0x6c] sm:$0x1]
      %v330 = vsel %vm276, 0, %v329
      %331 = vst [vmem:[#allocation2 + $0x6c] sm:$0x1] %v330
      %332 = vst [vmem:[#allocation2 + $0x70] sm:$0xf] 0
      %v333 = vld [vmem:[#allocation2 + $0x74] sm:$0x1]
      %v334 = vsel %vm276, 0, %v333
      %335 = vst [vmem:[#allocation2 + $0x74] sm:$0x1] %v334
      %336 = vst [vmem:[#allocation2 + $0x78] sm:$0xf] 0
      %v337 = vld [vmem:[#allocation2 + $0x7c] sm:$0x1]
      %v338 = vsel %vm276, 0, %v337
      %339 = vst [vmem:[#allocation2 + $0x7c] sm:$0x1] %v338
      %340 = vst [vmem:[#allocation2 + $0x80] sm:$0xf] 0
      %v341 = vld [vmem:[#allocation2 + $0x84] sm:$0x1]
      %v342 = vsel %vm276, 0, %v341
      %343 = vst [vmem:[#allocation2 + $0x84] sm:$0x1] %v342
      %344 = vst [vmem:[#allocation2 + $0x88] sm:$0xf] 0
      %v345 = vld [vmem:[#allocation2 + $0x8c] sm:$0x1]
      %v346 = vsel %vm276, 0, %v345
      %347 = vst [vmem:[#allocation2 + $0x8c] sm:$0x1] %v346
      %348 = vst [vmem:[#allocation2 + $0x90] sm:$0xf] 0
      %v349 = vld [vmem:[#allocation2 + $0x94] sm:$0x1]
      %v350 = vsel %vm276, 0, %v349
      %351 = vst [vmem:[#allocation2 + $0x94] sm:$0x1] %v350
      %352 = vst [vmem:[#allocation2 + $0x98] sm:$0xf] 0
      %v353 = vld [vmem:[#allocation2 + $0x9c] sm:$0x1]
      %v354 = vsel %vm276, 0, %v353
      %355 = vst [vmem:[#allocation2 + $0x9c] sm:$0x1] %v354
      %356 = vst [vmem:[#allocation2 + $0xa0] sm:$0xf] 0
      %v357 = vld [vmem:[#allocation2 + $0xa4] sm:$0x1]
      %v358 = vsel %vm276, 0, %v357
      %359 = vst [vmem:[#allocation2 + $0xa4] sm:$0x1] %v358
      %360 = vst [vmem:[#allocation2 + $0xa8] sm:$0xf] 0
      %v361 = vld [vmem:[#allocation2 + $0xac] sm:$0x1]
      %v362 = vsel %vm276, 0, %v361
      %363 = vst [vmem:[#allocation2 + $0xac] sm:$0x1] %v362
      %364 = vst [vmem:[#allocation2 + $0xb0] sm:$0xf] 0
      %v365 = vld [vmem:[#allocation2 + $0xb4] sm:$0x1]
      %v366 = vsel %vm276, 0, %v365
      %367 = vst [vmem:[#allocation2 + $0xb4] sm:$0x1] %v366
      %368 = vst [vmem:[#allocation2 + $0xb8] sm:$0xf] 0
      %v369 = vld [vmem:[#allocation2 + $0xbc] sm:$0x1]
      %v370 = vsel %vm276, 0, %v369
      %371 = vst [vmem:[#allocation2 + $0xbc] sm:$0x1] %v370
      %372 = vst [vmem:[#allocation2 + $0xc0] sm:$0xf] 0
      %v373 = vld [vmem:[#allocation2 + $0xc4] sm:$0x1]
      %v374 = vsel %vm276, 0, %v373
      %375 = vst [vmem:[#allocation2 + $0xc4] sm:$0x1] %v374
      %376 = vst [vmem:[#allocation2 + $0xc8] sm:$0xf] 0
      %v377 = vld [vmem:[#allocation2 + $0xcc] sm:$0x1]
      %v378 = vsel %vm276, 0, %v377
      %379 = vst [vmem:[#allocation2 + $0xcc] sm:$0x1] %v378
      %380 = vst [vmem:[#allocation2 + $0xd0] sm:$0xf] 0
      %v381 = vld [vmem:[#allocation2 + $0xd4] sm:$0x1]
      %v382 = vsel %vm276, 0, %v381
      %383 = vst [vmem:[#allocation2 + $0xd4] sm:$0x1] %v382
      %384 = vst [vmem:[#allocation2 + $0xd8] sm:$0xf] 0
      %v385 = vld [vmem:[#allocation2 + $0xdc] sm:$0x1]
      %v386 = vsel %vm276, 0, %v385
      %387 = vst [vmem:[#allocation2 + $0xdc] sm:$0x1] %v386
      %388 = vst [vmem:[#allocation2 + $0xe0] sm:$0xf] 0
      %v389 = vld [vmem:[#allocation2 + $0xe4] sm:$0x1]
      %v390 = vsel %vm276, 0, %v389
      %391 = vst [vmem:[#allocation2 + $0xe4] sm:$0x1] %v390
      %392 = vst [vmem:[#allocation2 + $0xe8] sm:$0xf] 0
      %v393 = vld [vmem:[#allocation2 + $0xec] sm:$0x1]
      %v394 = vsel %vm276, 0, %v393
      %395 = vst [vmem:[#allocation2 + $0xec] sm:$0x1] %v394
      %396 = vst [vmem:[#allocation2 + $0xf0] sm:$0xf] 0
      %v397 = vld [vmem:[#allocation2 + $0xf4] sm:$0x1]
      %v398 = vsel %vm276, 0, %v397
      %399 = vst [vmem:[#allocation2 + $0xf4] sm:$0x1] %v398
      %400 = vst [vmem:[#allocation2 + $0xf8] sm:$0xf] 0
      %v401 = vld [vmem:[#allocation2 + $0xfc] sm:$0x1]
      %v402 = vsel %vm276, 0, %v401
      %403 = vst [vmem:[#allocation2 + $0xfc] sm:$0x1] %v402
      %404 = vst [vmem:[#allocation2 + $0x100] sm:$0xf] 0
      %v405 = vld [vmem:[#allocation2 + $0x104] sm:$0x1]
      %v406 = vsel %vm276, 0, %v405
      %407 = vst [vmem:[#allocation2 + $0x104] sm:$0x1] %v406
      %408 = vst [vmem:[#allocation2 + $0x108] sm:$0xf] 0
      %v409 = vld [vmem:[#allocation2 + $0x10c] sm:$0x1]
      %v410 = vsel %vm276, 0, %v409
      %411 = vst [vmem:[#allocation2 + $0x10c] sm:$0x1] %v410
      %412 = vst [vmem:[#allocation2 + $0x110] sm:$0xf] 0
      %v413 = vld [vmem:[#allocation2 + $0x114] sm:$0x1]
      %v414 = vsel %vm276, 0, %v413
      %415 = vst [vmem:[#allocation2 + $0x114] sm:$0x1] %v414
      %416 = vst [vmem:[#allocation2 + $0x118] sm:$0xf] 0
      %v417 = vld [vmem:[#allocation2 + $0x11c] sm:$0x1]
      %v418 = vsel %vm276, 0, %v417
      %419 = vst [vmem:[#allocation2 + $0x11c] sm:$0x1] %v418
      %v420 = vld [vmem:[%s261] sm:$0xf]
      %v421 = vld [vmem:[%s261 + $0x4] sm:$0xf]
      %v422 = vld [vmem:[%s261 + $0x8] sm:$0xf]
      %v423 = vld [vmem:[%s261 + $0xc] sm:$0xf]
      %v424 = vld [vmem:[%s261 + $0x10] sm:$0xf]
      %v425 = vld [vmem:[%s261 + $0x14] sm:$0xf]
      %v426 = vld [vmem:[%s261 + $0x18] sm:$0xf]
      %v427 = vld [vmem:[%s261 + $0x1c] sm:$0xf]
      %v428 = vld [vmem:[%s2] sm:$0xf]
      %v429 = vld [vmem:[%s2 + $0x4] sm:$0xf]
      %v430 = vld [vmem:[%s2 + $0x8] sm:$0xf]
      %v431 = vld [vmem:[%s2 + $0xc] sm:$0xf]
      %v432 = vld [vmem:[%s2 + $0x10] sm:$0xf]
      %v433 = vld [vmem:[%s2 + $0x14] sm:$0xf]
      %v434 = vld [vmem:[%s2 + $0x18] sm:$0xf]
      %v435 = vld [vmem:[%s2 + $0x1c] sm:$0xf]
      %v436 = vld [vmem:[%s2 + $0x20] sm:$0xf]
      %v437 = vld [vmem:[%s2 + $0x24] sm:$0xf]
      %v438 = vld [vmem:[%s2 + $0x28] sm:$0xf]
      %v439 = vld [vmem:[%s2 + $0x2c] sm:$0xf]
      %v440 = vld [vmem:[%s2 + $0x30] sm:$0xf]
      %v441 = vld [vmem:[%s2 + $0x34] sm:$0xf]
      %v442 = vld [vmem:[%s2 + $0x38] sm:$0xf]
      %v443 = vld [vmem:[%s2 + $0x3c] sm:$0xf]
      %v444 = vld [vmem:[%s3] sm:$0x1]
      %v446 = vlaneseq
      %v447 = vshrl.u32 %v446, 7
      %v448 = vsub.s32 0, %v447
      %v449 = vrot.slane %v444, %v448
      %v459 = vunpack.c.l.b16 %v420
      %v460 = vunpack.c.l.b16 %v421
      %v461 = vunpack.c.l.b16 %v422
      %v462 = vunpack.c.l.b16 %v423
      %v463 = vunpack.c.l.b16 %v424
      %v464 = vunpack.c.l.b16 %v425
      %v465 = vunpack.c.l.b16 %v426
      %v466 = vunpack.c.l.b16 %v427
      %v467 = vpack.c.b16 %v460, %v459
      %v468 = vpack.c.b16 %v462, %v461
      %v469 = vpack.c.b16 %v464, %v463
      %v470 = vpack.c.b16 %v466, %v465
      %v491 = vunpack.c.l.b16 %v428
      %v492 = vunpack.c.l.b16 %v429
      %v493 = vunpack.c.l.b16 %v430
      %v494 = vunpack.c.l.b16 %v431
      %v495 = vunpack.c.l.b16 %v432
      %v496 = vunpack.c.l.b16 %v433
      %v497 = vunpack.c.l.b16 %v434
      %v498 = vunpack.c.l.b16 %v435
      %v499 = vunpack.c.l.b16 %v436
      %v500 = vunpack.c.l.b16 %v437
      %v501 = vunpack.c.l.b16 %v438
      %v502 = vunpack.c.l.b16 %v439
      %v503 = vunpack.c.l.b16 %v440
      %v504 = vunpack.c.l.b16 %v441
      %v505 = vunpack.c.l.b16 %v442
      %v506 = vunpack.c.l.b16 %v443
      %v507 = vpack.c.b16 %v492, %v491
      %v508 = vpack.c.b16 %v494, %v493
      %v509 = vpack.c.b16 %v496, %v495
      %v510 = vpack.c.b16 %v498, %v497
      %v511 = vpack.c.b16 %v500, %v499
      %v512 = vpack.c.b16 %v502, %v501
      %v513 = vpack.c.b16 %v504, %v503
      %v514 = vpack.c.b16 %v506, %v505
      %523 = vmatprep.subr.bf16.mxu0 0
      %524 = vmatpush1.bf16.msra.mxu0 %v514
      %525 = vmatprep.subr.bf16.mxu0 0
      %526 = vmatpush1.bf16.msra.mxu0 %v513
      %527 = vmatprep.subr.bf16.mxu0 0
      %528 = vmatpush1.bf16.msra.mxu0 %v512
      %529 = vmatprep.subr.bf16.mxu0 0
      %530 = vmatpush1.bf16.msra.mxu0 %v511
      %531 = vmatprep.subr.bf16.mxu0 0
      %532 = vmatpush1.bf16.msra.mxu0 %v510
      %533 = vmatprep.subr.bf16.mxu0 0
      %534 = vmatpush1.bf16.msra.mxu0 %v509
      %535 = vmatprep.subr.bf16.mxu0 0
      %536 = vmatpush1.bf16.msra.mxu0 %v508
      %537 = vmatprep.subr.bf16.mxu0 0
      %538 = vmatpush1.bf16.msra.mxu0 %v507
      %539 = vmatprep.subr.bf16.mxu0 0
      %540 = vmatpush2.bf16.msra.mxu0 0
      %541 = vmatprep.subr.bf16.mxu0 0
      %542 = vmatpush2.bf16.msra.mxu0 0
      %543 = vmatprep.subr.bf16.mxu0 0
      %544 = vmatpush2.bf16.msra.mxu0 0
      %545 = vmatprep.subr.bf16.mxu0 0
      %546 = vmatpush2.bf16.msra.mxu0 0
      %547 = vmatprep.subr.bf16.mxu0 0
      %548 = vmatpush2.bf16.msra.mxu0 0
      %549 = vmatprep.subr.bf16.mxu0 0
      %550 = vmatpush2.bf16.msra.mxu0 0
      %551 = vmatprep.subr.bf16.mxu0 0
      %552 = vmatpush2.bf16.msra.mxu0 0
      %553 = vmatprep.subr.bf16.mxu0 0
      %554 = vmatpush2.bf16.msra.mxu0 0
      %555 = vmatprep.mubr.bf16.mxu0 0
      %556 = vmatmul.mubr.bf16.gmra.mxu0 %v467
      %v557 = vpop.f32.mrf.mxu0
      %v558 = vadd.f32 %v449, %v557
      %v559 = vpop.f32.mrf.mxu0
      %v560 = vpop.f32.mrf.mxu0
      %v561 = vadd.f32 %v449, %v560
      %v562 = vpop.f32.mrf.mxu0
      %563 = vmatprep.mubr.bf16.mxu0 0
      %564 = vmatmul.mubr.bf16.gmra.mxu0 %v468
      %v565 = vpop.f32.mrf.mxu0
      %v566 = vadd.f32 %v449, %v565
      %v567 = vpop.f32.mrf.mxu0
      %v568 = vpop.f32.mrf.mxu0
      %v569 = vadd.f32 %v449, %v568
      %v570 = vpop.f32.mrf.mxu0
      %571 = vmatprep.mubr.bf16.mxu0 0
      %572 = vmatmul.mubr.bf16.gmra.mxu0 %v469
      %v573 = vpop.f32.mrf.mxu0
      %v574 = vadd.f32 %v449, %v573
      %v575 = vpop.f32.mrf.mxu0
      %v576 = vpop.f32.mrf.mxu0
      %v577 = vadd.f32 %v449, %v576
      %v578 = vpop.f32.mrf.mxu0
      %579 = vmatprep.mubr.bf16.mxu0 0
      %580 = vmatmul.mubr.bf16.gmra.mxu0 %v470
      %v581 = vpop.f32.mrf.mxu0
      %v582 = vadd.f32 %v449, %v581
      %v583 = vpop.f32.mrf.mxu0
      %v584 = vpop.f32.mrf.mxu0
      %v585 = vadd.f32 %v449, %v584
      %v586 = vpop.f32.mrf.mxu0
      %587 = vdwg.mxu0
      %v588 = vmax.f32 %v558, 0.0
      %v589 = vmax.f32 %v561, 0.0
      %v590 = vmax.f32 %v566, 0.0
      %v591 = vmax.f32 %v569, 0.0
      %v592 = vmax.f32 %v574, 0.0
      %v593 = vmax.f32 %v577, 0.0
      %v594 = vmax.f32 %v582, 0.0
      %v595 = vmax.f32 %v585, 0.0
      %v596 = vpack.c.bf16 %v589, %v588
      %v597 = vpack.c.bf16 %v591, %v590
      %v598 = vpack.c.bf16 %v593, %v592
      %v599 = vpack.c.bf16 %v595, %v594
      %v604 = vunpack.c.l.b16 %v596
      %v605 = vunpack.c.h.b16 %v596
      %v606 = vunpack.c.l.b16 %v597
      %v607 = vunpack.c.h.b16 %v597
      %v608 = vunpack.c.l.b16 %v598
      %v609 = vunpack.c.h.b16 %v598
      %v610 = vunpack.c.l.b16 %v599
      %v611 = vunpack.c.h.b16 %v599
      %v612 = vpack.c.b16 %v604, %v604
      %v613 = vpack.c.b16 %v605, %v605
      %v614 = vpack.c.b16 %v606, %v606
      %v615 = vpack.c.b16 %v607, %v607
      %v616 = vpack.c.b16 %v608, %v608
      %v617 = vpack.c.b16 %v609, %v609
      %v618 = vpack.c.b16 %v610, %v610
      %v619 = vpack.c.b16 %v611, %v611
      %s628 = scalar_lea.vmem [#allocation2], 216
      %629 = vst [vmem:[%s628] sm:$0xf] %v612
      %630 = vst [vmem:[%s628 + $0x8] sm:$0xf] %v613
      %631 = vst [vmem:[%s628 + $0x10] sm:$0xf] %v614
      %632 = vst [vmem:[%s628 + $0x18] sm:$0xf] %v615
      %633 = vst [vmem:[%s628 + $0x20] sm:$0xf] %v616
      %634 = vst [vmem:[%s628 + $0x28] sm:$0xf] %v617
      %635 = vst [vmem:[%s628 + $0x30] sm:$0xf] %v618
      %636 = vst [vmem:[%s628 + $0x38] sm:$0xf] %v619
      %v637 = vld [vmem:[%s261 + $0x20] sm:$0xf]
      %v638 = vld [vmem:[%s261 + $0x24] sm:$0xf]
      %v639 = vld [vmem:[%s261 + $0x28] sm:$0xf]
      %v640 = vld [vmem:[%s261 + $0x2c] sm:$0xf]
      %v641 = vld [vmem:[%s261 + $0x30] sm:$0xf]
      %v642 = vld [vmem:[%s261 + $0x34] sm:$0xf]
      %v643 = vld [vmem:[%s261 + $0x38] sm:$0xf]
      %v644 = vld [vmem:[%s261 + $0x3c] sm:$0xf]
      %s645 = scalar_lea.vmem %s2, 64
      %v646 = vld [vmem:[%s645] sm:$0xf]
      %v647 = vld [vmem:[%s645 + $0x4] sm:$0xf]
      %v648 = vld [vmem:[%s645 + $0x8] sm:$0xf]
      %v649 = vld [vmem:[%s645 + $0xc] sm:$0xf]
      %v650 = vld [vmem:[%s645 + $0x10] sm:$0xf]
      %v651 = vld [vmem:[%s645 + $0x14] sm:$0xf]
      %v652 = vld [vmem:[%s645 + $0x18] sm:$0xf]
      %v653 = vld [vmem:[%s645 + $0x1c] sm:$0xf]
      %v654 = vld [vmem:[%s645 + $0x20] sm:$0xf]
      %v655 = vld [vmem:[%s645 + $0x24] sm:$0xf]
      %v656 = vld [vmem:[%s645 + $0x28] sm:$0xf]
      %v657 = vld [vmem:[%s645 + $0x2c] sm:$0xf]
      %v658 = vld [vmem:[%s645 + $0x30] sm:$0xf]
      %v659 = vld [vmem:[%s645 + $0x34] sm:$0xf]
      %v660 = vld [vmem:[%s645 + $0x38] sm:$0xf]
      %v661 = vld [vmem:[%s645 + $0x3c] sm:$0xf]
      %s662 = scalar_lea.vmem %s3, 1
      %v663 = vld [vmem:[%s662] sm:$0x1]
      %v665 = vlaneseq
      %v666 = vshrl.u32 %v665, 7
      %v667 = vsub.s32 0, %v666
      %v668 = vrot.slane %v663, %v667
      %v678 = vunpack.c.l.b16 %v637
      %v679 = vunpack.c.l.b16 %v638
      %v680 = vunpack.c.l.b16 %v639
      %v681 = vunpack.c.l.b16 %v640
      %v682 = vunpack.c.l.b16 %v641
      %v683 = vunpack.c.l.b16 %v642
      %v684 = vunpack.c.l.b16 %v643
      %v685 = vunpack.c.l.b16 %v644
      %v686 = vpack.c.b16 %v679, %v678
      %v687 = vpack.c.b16 %v681, %v680
      %v688 = vpack.c.b16 %v683, %v682
      %v689 = vpack.c.b16 %v685, %v684
      %v710 = vunpack.c.l.b16 %v646
      %v711 = vunpack.c.l.b16 %v647
      %v712 = vunpack.c.l.b16 %v648
      %v713 = vunpack.c.l.b16 %v649
      %v714 = vunpack.c.l.b16 %v650
      %v715 = vunpack.c.l.b16 %v651
      %v716 = vunpack.c.l.b16 %v652
      %v717 = vunpack.c.l.b16 %v653
      %v718 = vunpack.c.l.b16 %v654
      %v719 = vunpack.c.l.b16 %v655
      %v720 = vunpack.c.l.b16 %v656
      %v721 = vunpack.c.l.b16 %v657
      %v722 = vunpack.c.l.b16 %v658
      %v723 = vunpack.c.l.b16 %v659
      %v724 = vunpack.c.l.b16 %v660
      %v725 = vunpack.c.l.b16 %v661
      %v726 = vpack.c.b16 %v711, %v710
      %v727 = vpack.c.b16 %v713, %v712
      %v728 = vpack.c.b16 %v715, %v714
      %v729 = vpack.c.b16 %v717, %v716
      %v730 = vpack.c.b16 %v719, %v718
      %v731 = vpack.c.b16 %v721, %v720
      %v732 = vpack.c.b16 %v723, %v722
      %v733 = vpack.c.b16 %v725, %v724
      %742 = vmatprep.subr.bf16.mxu0 0
      %743 = vmatpush1.bf16.msra.mxu0 %v733
      %744 = vmatprep.subr.bf16.mxu0 0
      %745 = vmatpush1.bf16.msra.mxu0 %v732
      %746 = vmatprep.subr.bf16.mxu0 0
      %747 = vmatpush1.bf16.msra.mxu0 %v731
      %748 = vmatprep.subr.bf16.mxu0 0
      %749 = vmatpush1.bf16.msra.mxu0 %v730
      %750 = vmatprep.subr.bf16.mxu0 0
      %751 = vmatpush1.bf16.msra.mxu0 %v729
      %752 = vmatprep.subr.bf16.mxu0 0
      %753 = vmatpush1.bf16.msra.mxu0 %v728
      %754 = vmatprep.subr.bf16.mxu0 0
      %755 = vmatpush1.bf16.msra.mxu0 %v727
      %756 = vmatprep.subr.bf16.mxu0 0
      %757 = vmatpush1.bf16.msra.mxu0 %v726
      %758 = vmatprep.subr.bf16.mxu0 0
      %759 = vmatpush2.bf16.msra.mxu0 0
      %760 = vmatprep.subr.bf16.mxu0 0
      %761 = vmatpush2.bf16.msra.mxu0 0
      %762 = vmatprep.subr.bf16.mxu0 0
      %763 = vmatpush2.bf16.msra.mxu0 0
      %764 = vmatprep.subr.bf16.mxu0 0
      %765 = vmatpush2.bf16.msra.mxu0 0
      %766 = vmatprep.subr.bf16.mxu0 0
      %767 = vmatpush2.bf16.msra.mxu0 0
      %768 = vmatprep.subr.bf16.mxu0 0
      %769 = vmatpush2.bf16.msra.mxu0 0
      %770 = vmatprep.subr.bf16.mxu0 0
      %771 = vmatpush2.bf16.msra.mxu0 0
      %772 = vmatprep.subr.bf16.mxu0 0
      %773 = vmatpush2.bf16.msra.mxu0 0
      %774 = vmatprep.mubr.bf16.mxu0 0
      %775 = vmatmul.mubr.bf16.gmra.mxu0 %v686
      %v776 = vpop.f32.mrf.mxu0
      %v777 = vadd.f32 %v668, %v776
      %v778 = vpop.f32.mrf.mxu0
      %v779 = vpop.f32.mrf.mxu0
      %v780 = vadd.f32 %v668, %v779
      %v781 = vpop.f32.mrf.mxu0
      %782 = vmatprep.mubr.bf16.mxu0 0
      %783 = vmatmul.mubr.bf16.gmra.mxu0 %v687
      %v784 = vpop.f32.mrf.mxu0
      %v785 = vadd.f32 %v668, %v784
      %v786 = vpop.f32.mrf.mxu0
      %v787 = vpop.f32.mrf.mxu0
      %v788 = vadd.f32 %v668, %v787
      %v789 = vpop.f32.mrf.mxu0
      %790 = vmatprep.mubr.bf16.mxu0 0
      %791 = vmatmul.mubr.bf16.gmra.mxu0 %v688
      %v792 = vpop.f32.mrf.mxu0
      %v793 = vadd.f32 %v668, %v792
      %v794 = vpop.f32.mrf.mxu0
      %v795 = vpop.f32.mrf.mxu0
      %v796 = vadd.f32 %v668, %v795
      %v797 = vpop.f32.mrf.mxu0
      %798 = vmatprep.mubr.bf16.mxu0 0
      %799 = vmatmul.mubr.bf16.gmra.mxu0 %v689
      %v800 = vpop.f32.mrf.mxu0
      %v801 = vadd.f32 %v668, %v800
      %v802 = vpop.f32.mrf.mxu0
      %v803 = vpop.f32.mrf.mxu0
      %v804 = vadd.f32 %v668, %v803
      %v805 = vpop.f32.mrf.mxu0
      %806 = vdwg.mxu0
      %v807 = vmax.f32 %v777, 0.0
      %v808 = vmax.f32 %v780, 0.0
      %v809 = vmax.f32 %v785, 0.0
      %v810 = vmax.f32 %v788, 0.0
      %v811 = vmax.f32 %v793, 0.0
      %v812 = vmax.f32 %v796, 0.0
      %v813 = vmax.f32 %v801, 0.0
      %v814 = vmax.f32 %v804, 0.0
      %v815 = vpack.c.bf16 %v808, %v807
      %v816 = vpack.c.bf16 %v810, %v809
      %v817 = vpack.c.bf16 %v812, %v811
      %v818 = vpack.c.bf16 %v814, %v813
      %v823 = vunpack.c.l.b16 %v815
      %v824 = vunpack.c.h.b16 %v815
      %v825 = vunpack.c.l.b16 %v816
      %v826 = vunpack.c.h.b16 %v816
      %v827 = vunpack.c.l.b16 %v817
      %v828 = vunpack.c.h.b16 %v817
      %v829 = vunpack.c.l.b16 %v818
      %v830 = vunpack.c.h.b16 %v818
      %v831 = vpack.c.b16 %v823, %v823
      %v832 = vpack.c.b16 %v824, %v824
      %v833 = vpack.c.b16 %v825, %v825
      %v834 = vpack.c.b16 %v826, %v826
      %v835 = vpack.c.b16 %v827, %v827
      %v836 = vpack.c.b16 %v828, %v828
      %v837 = vpack.c.b16 %v829, %v829
      %v838 = vpack.c.b16 %v830, %v830
      %v840 = vshrl.u32 %v831, 16
      %v842 = vrot.slane %v840, 7
      %v843 = vshll.u32 %v831, 16
      %v845 = vor.u32 %v842, %v843
      %v846 = vrot.slane %v842, 4
      %v848 = vshrl.u32 %v832, 16
      %v850 = vrot.slane %v848, 7
      %v851 = vshll.u32 %v832, 16
      %v853 = vor.u32 %v850, %v851
      %v854 = vrot.slane %v850, 4
      %v856 = vshrl.u32 %v833, 16
      %v858 = vrot.slane %v856, 7
      %v859 = vshll.u32 %v833, 16
      %v861 = vor.u32 %v858, %v859
      %v862 = vrot.slane %v858, 4
      %v864 = vshrl.u32 %v834, 16
      %v866 = vrot.slane %v864, 7
      %v867 = vshll.u32 %v834, 16
      %v869 = vor.u32 %v866, %v867
      %v870 = vrot.slane %v866, 4
      %v872 = vshrl.u32 %v835, 16
      %v874 = vrot.slane %v872, 7
      %v875 = vshll.u32 %v835, 16
      %v877 = vor.u32 %v874, %v875
      %v878 = vrot.slane %v874, 4
      %v880 = vshrl.u32 %v836, 16
      %v882 = vrot.slane %v880, 7
      %v883 = vshll.u32 %v836, 16
      %v885 = vor.u32 %v882, %v883
      %v886 = vrot.slane %v882, 4
      %v888 = vshrl.u32 %v837, 16
      %v890 = vrot.slane %v888, 7
      %v891 = vshll.u32 %v837, 16
      %v893 = vor.u32 %v890, %v891
      %v894 = vrot.slane %v890, 4
      %v896 = vshrl.u32 %v838, 16
      %v898 = vrot.slane %v896, 7
      %v899 = vshll.u32 %v838, 16
      %v901 = vor.u32 %v898, %v899
      %v902 = vrot.slane %v898, 4
      %s919 = scalar_lea.vmem [#allocation2], 144
      %vm920 = vcmask 1043456
      %vm921 = vsmask.f32 7938
      %vm922 = vmand %vm920, %vm921
      %v923 = vld [vmem:[%s919] sm:$0xf]
      %v924 = vsel %vm922, %v845, %v923
      %925 = vst [vmem:[%s919] sm:$0xf] %v924
      %v926 = vld [vmem:[%s919 + $0x4] sm:$0x1]
      %v927 = vsel %vm276, %v846, %v926
      %928 = vst [vmem:[%s919 + $0x4] sm:$0x1] %v927
      %v929 = vld [vmem:[%s919 + $0x8] sm:$0xf]
      %v930 = vsel %vm922, %v853, %v929
      %931 = vst [vmem:[%s919 + $0x8] sm:$0xf] %v930
      %v932 = vld [vmem:[%s919 + $0xc] sm:$0x1]
      %v933 = vsel %vm276, %v854, %v932
      %934 = vst [vmem:[%s919 + $0xc] sm:$0x1] %v933
      %v935 = vld [vmem:[%s919 + $0x10] sm:$0xf]
      %v936 = vsel %vm922, %v861, %v935
      %937 = vst [vmem:[%s919 + $0x10] sm:$0xf] %v936
      %v938 = vld [vmem:[%s919 + $0x14] sm:$0x1]
      %v939 = vsel %vm276, %v862, %v938
      %940 = vst [vmem:[%s919 + $0x14] sm:$0x1] %v939
      %v941 = vld [vmem:[%s919 + $0x18] sm:$0xf]
      %v942 = vsel %vm922, %v869, %v941
      %943 = vst [vmem:[%s919 + $0x18] sm:$0xf] %v942
      %v944 = vld [vmem:[%s919 + $0x1c] sm:$0x1]
      %v945 = vsel %vm276, %v870, %v944
      %946 = vst [vmem:[%s919 + $0x1c] sm:$0x1] %v945
      %v947 = vld [vmem:[%s919 + $0x20] sm:$0xf]
      %v948 = vsel %vm922, %v877, %v947
      %949 = vst [vmem:[%s919 + $0x20] sm:$0xf] %v948
      %v950 = vld [vmem:[%s919 + $0x24] sm:$0x1]
      %v951 = vsel %vm276, %v878, %v950
      %952 = vst [vmem:[%s919 + $0x24] sm:$0x1] %v951
      %v953 = vld [vmem:[%s919 + $0x28] sm:$0xf]
      %v954 = vsel %vm922, %v885, %v953
      %955 = vst [vmem:[%s919 + $0x28] sm:$0xf] %v954
      %v956 = vld [vmem:[%s919 + $0x2c] sm:$0x1]
      %v957 = vsel %vm276, %v886, %v956
      %958 = vst [vmem:[%s919 + $0x2c] sm:$0x1] %v957
      %v959 = vld [vmem:[%s919 + $0x30] sm:$0xf]
      %v960 = vsel %vm922, %v893, %v959
      %961 = vst [vmem:[%s919 + $0x30] sm:$0xf] %v960
      %v962 = vld [vmem:[%s919 + $0x34] sm:$0x1]
      %v963 = vsel %vm276, %v894, %v962
      %964 = vst [vmem:[%s919 + $0x34] sm:$0x1] %v963
      %v965 = vld [vmem:[%s919 + $0x38] sm:$0xf]
      %v966 = vsel %vm922, %v901, %v965
      %967 = vst [vmem:[%s919 + $0x38] sm:$0xf] %v966
      %v968 = vld [vmem:[%s919 + $0x3c] sm:$0x1]
      %v969 = vsel %vm276, %v902, %v968
      %970 = vst [vmem:[%s919 + $0x3c] sm:$0x1] %v969
      %v971 = vld [vmem:[%s261 + $0x40] sm:$0xf]
      %v972 = vld [vmem:[%s261 + $0x44] sm:$0xf]
      %v973 = vld [vmem:[%s261 + $0x48] sm:$0xf]
      %v974 = vld [vmem:[%s261 + $0x4c] sm:$0xf]
      %v975 = vld [vmem:[%s261 + $0x50] sm:$0xf]
      %v976 = vld [vmem:[%s261 + $0x54] sm:$0xf]
      %v977 = vld [vmem:[%s261 + $0x58] sm:$0xf]
      %v978 = vld [vmem:[%s261 + $0x5c] sm:$0xf]
      %s979 = scalar_lea.vmem %s2, 128
      %v980 = vld [vmem:[%s979] sm:$0xf]
      %v981 = vld [vmem:[%s979 + $0x4] sm:$0xf]
      %v982 = vld [vmem:[%s979 + $0x8] sm:$0xf]
      %v983 = vld [vmem:[%s979 + $0xc] sm:$0xf]
      %v984 = vld [vmem:[%s979 + $0x10] sm:$0xf]
      %v985 = vld [vmem:[%s979 + $0x14] sm:$0xf]
      %v986 = vld [vmem:[%s979 + $0x18] sm:$0xf]
      %v987 = vld [vmem:[%s979 + $0x1c] sm:$0xf]
      %v988 = vld [vmem:[%s979 + $0x20] sm:$0xf]
      %v989 = vld [vmem:[%s979 + $0x24] sm:$0xf]
      %v990 = vld [vmem:[%s979 + $0x28] sm:$0xf]
      %v991 = vld [vmem:[%s979 + $0x2c] sm:$0xf]
      %v992 = vld [vmem:[%s979 + $0x30] sm:$0xf]
      %v993 = vld [vmem:[%s979 + $0x34] sm:$0xf]
      %v994 = vld [vmem:[%s979 + $0x38] sm:$0xf]
      %v995 = vld [vmem:[%s979 + $0x3c] sm:$0xf]
      %s996 = scalar_lea.vmem %s3, 2
      %v997 = vld [vmem:[%s996] sm:$0x1]
      %v999 = vlaneseq
      %v1000 = vshrl.u32 %v999, 7
      %v1001 = vsub.s32 0, %v1000
      %v1002 = vrot.slane %v997, %v1001
      %v1012 = vunpack.c.l.b16 %v971
      %v1013 = vunpack.c.l.b16 %v972
      %v1014 = vunpack.c.l.b16 %v973
      %v1015 = vunpack.c.l.b16 %v974
      %v1016 = vunpack.c.l.b16 %v975
      %v1017 = vunpack.c.l.b16 %v976
      %v1018 = vunpack.c.l.b16 %v977
      %v1019 = vunpack.c.l.b16 %v978
      %v1020 = vpack.c.b16 %v1013, %v1012
      %v1021 = vpack.c.b16 %v1015, %v1014
      %v1022 = vpack.c.b16 %v1017, %v1016
      %v1023 = vpack.c.b16 %v1019, %v1018
      %v1044 = vunpack.c.l.b16 %v980
      %v1045 = vunpack.c.l.b16 %v981
      %v1046 = vunpack.c.l.b16 %v982
      %v1047 = vunpack.c.l.b16 %v983
      %v1048 = vunpack.c.l.b16 %v984
      %v1049 = vunpack.c.l.b16 %v985
      %v1050 = vunpack.c.l.b16 %v986
      %v1051 = vunpack.c.l.b16 %v987
      %v1052 = vunpack.c.l.b16 %v988
      %v1053 = vunpack.c.l.b16 %v989
      %v1054 = vunpack.c.l.b16 %v990
      %v1055 = vunpack.c.l.b16 %v991
      %v1056 = vunpack.c.l.b16 %v992
      %v1057 = vunpack.c.l.b16 %v993
      %v1058 = vunpack.c.l.b16 %v994
      %v1059 = vunpack.c.l.b16 %v995
      %v1060 = vpack.c.b16 %v1045, %v1044
      %v1061 = vpack.c.b16 %v1047, %v1046
      %v1062 = vpack.c.b16 %v1049, %v1048
      %v1063 = vpack.c.b16 %v1051, %v1050
      %v1064 = vpack.c.b16 %v1053, %v1052
      %v1065 = vpack.c.b16 %v1055, %v1054
      %v1066 = vpack.c.b16 %v1057, %v1056
      %v1067 = vpack.c.b16 %v1059, %v1058
      %1076 = vmatprep.subr.bf16.mxu0 0
      %1077 = vmatpush1.bf16.msra.mxu0 %v1067
      %1078 = vmatprep.subr.bf16.mxu0 0
      %1079 = vmatpush1.bf16.msra.mxu0 %v1066
      %1080 = vmatprep.subr.bf16.mxu0 0
      %1081 = vmatpush1.bf16.msra.mxu0 %v1065
      %1082 = vmatprep.subr.bf16.mxu0 0
      %1083 = vmatpush1.bf16.msra.mxu0 %v1064
      %1084 = vmatprep.subr.bf16.mxu0 0
      %1085 = vmatpush1.bf16.msra.mxu0 %v1063
      %1086 = vmatprep.subr.bf16.mxu0 0
      %1087 = vmatpush1.bf16.msra.mxu0 %v1062
      %1088 = vmatprep.subr.bf16.mxu0 0
      %1089 = vmatpush1.bf16.msra.mxu0 %v1061
      %1090 = vmatprep.subr.bf16.mxu0 0
      %1091 = vmatpush1.bf16.msra.mxu0 %v1060
      %1092 = vmatprep.subr.bf16.mxu0 0
      %1093 = vmatpush2.bf16.msra.mxu0 0
      %1094 = vmatprep.subr.bf16.mxu0 0
      %1095 = vmatpush2.bf16.msra.mxu0 0
      %1096 = vmatprep.subr.bf16.mxu0 0
      %1097 = vmatpush2.bf16.msra.mxu0 0
      %1098 = vmatprep.subr.bf16.mxu0 0
      %1099 = vmatpush2.bf16.msra.mxu0 0
      %1100 = vmatprep.subr.bf16.mxu0 0
      %1101 = vmatpush2.bf16.msra.mxu0 0
      %1102 = vmatprep.subr.bf16.mxu0 0
      %1103 = vmatpush2.bf16.msra.mxu0 0
      %1104 = vmatprep.subr.bf16.mxu0 0
      %1105 = vmatpush2.bf16.msra.mxu0 0
      %1106 = vmatprep.subr.bf16.mxu0 0
      %1107 = vmatpush2.bf16.msra.mxu0 0
      %1108 = vmatprep.mubr.bf16.mxu0 0
      %1109 = vmatmul.mubr.bf16.gmra.mxu0 %v1020
      %v1110 = vpop.f32.mrf.mxu0
      %v1111 = vadd.f32 %v1002, %v1110
      %v1112 = vpop.f32.mrf.mxu0
      %v1113 = vpop.f32.mrf.mxu0
      %v1114 = vadd.f32 %v1002, %v1113
      %v1115 = vpop.f32.mrf.mxu0
      %1116 = vmatprep.mubr.bf16.mxu0 0
      %1117 = vmatmul.mubr.bf16.gmra.mxu0 %v1021
      %v1118 = vpop.f32.mrf.mxu0
      %v1119 = vadd.f32 %v1002, %v1118
      %v1120 = vpop.f32.mrf.mxu0
      %v1121 = vpop.f32.mrf.mxu0
      %v1122 = vadd.f32 %v1002, %v1121
      %v1123 = vpop.f32.mrf.mxu0
      %1124 = vmatprep.mubr.bf16.mxu0 0
      %1125 = vmatmul.mubr.bf16.gmra.mxu0 %v1022
      %v1126 = vpop.f32.mrf.mxu0
      %v1127 = vadd.f32 %v1002, %v1126
      %v1128 = vpop.f32.mrf.mxu0
      %v1129 = vpop.f32.mrf.mxu0
      %v1130 = vadd.f32 %v1002, %v1129
      %v1131 = vpop.f32.mrf.mxu0
      %1132 = vmatprep.mubr.bf16.mxu0 0
      %1133 = vmatmul.mubr.bf16.gmra.mxu0 %v1023
      %v1134 = vpop.f32.mrf.mxu0
      %v1135 = vadd.f32 %v1002, %v1134
      %v1136 = vpop.f32.mrf.mxu0
      %v1137 = vpop.f32.mrf.mxu0
      %v1138 = vadd.f32 %v1002, %v1137
      %v1139 = vpop.f32.mrf.mxu0
      %1140 = vdwg.mxu0
      %v1141 = vmax.f32 %v1111, 0.0
      %v1142 = vmax.f32 %v1114, 0.0
      %v1143 = vmax.f32 %v1119, 0.0
      %v1144 = vmax.f32 %v1122, 0.0
      %v1145 = vmax.f32 %v1127, 0.0
      %v1146 = vmax.f32 %v1130, 0.0
      %v1147 = vmax.f32 %v1135, 0.0
      %v1148 = vmax.f32 %v1138, 0.0
      %v1149 = vpack.c.bf16 %v1142, %v1141
      %v1150 = vpack.c.bf16 %v1144, %v1143
      %v1151 = vpack.c.bf16 %v1146, %v1145
      %v1152 = vpack.c.bf16 %v1148, %v1147
      %v1157 = vunpack.c.l.b16 %v1149
      %v1158 = vunpack.c.h.b16 %v1149
      %v1159 = vunpack.c.l.b16 %v1150
      %v1160 = vunpack.c.h.b16 %v1150
      %v1161 = vunpack.c.l.b16 %v1151
      %v1162 = vunpack.c.h.b16 %v1151
      %v1163 = vunpack.c.l.b16 %v1152
      %v1164 = vunpack.c.h.b16 %v1152
      %v1165 = vpack.c.b16 %v1157, %v1157
      %v1166 = vpack.c.b16 %v1158, %v1158
      %v1167 = vpack.c.b16 %v1159, %v1159
      %v1168 = vpack.c.b16 %v1160, %v1160
      %v1169 = vpack.c.b16 %v1161, %v1161
      %v1170 = vpack.c.b16 %v1162, %v1162
      %v1171 = vpack.c.b16 %v1163, %v1163
      %v1172 = vpack.c.b16 %v1164, %v1164
      %s1181 = scalar_lea.vmem [#allocation2], 80
      %1182 = vst [vmem:[%s1181] sm:$0xf] %v1165
      %1183 = vst [vmem:[%s1181 + $0x8] sm:$0xf] %v1166
      %1184 = vst [vmem:[%s1181 + $0x10] sm:$0xf] %v1167
      %1185 = vst [vmem:[%s1181 + $0x18] sm:$0xf] %v1168
      %1186 = vst [vmem:[%s1181 + $0x20] sm:$0xf] %v1169
      %1187 = vst [vmem:[%s1181 + $0x28] sm:$0xf] %v1170
      %1188 = vst [vmem:[%s1181 + $0x30] sm:$0xf] %v1171
      %1189 = vst [vmem:[%s1181 + $0x38] sm:$0xf] %v1172
      %v1190 = vld [vmem:[%s261 + $0x60] sm:$0xf]
      %v1191 = vld [vmem:[%s261 + $0x64] sm:$0xf]
      %v1192 = vld [vmem:[%s261 + $0x68] sm:$0xf]
      %v1193 = vld [vmem:[%s261 + $0x6c] sm:$0xf]
      %v1194 = vld [vmem:[%s261 + $0x70] sm:$0xf]
      %v1195 = vld [vmem:[%s261 + $0x74] sm:$0xf]
      %v1196 = vld [vmem:[%s261 + $0x78] sm:$0xf]
      %v1197 = vld [vmem:[%s261 + $0x7c] sm:$0xf]
      %s1198 = scalar_lea.vmem %s2, 192
      %v1199 = vld [vmem:[%s1198] sm:$0xf]
      %v1200 = vld [vmem:[%s1198 + $0x4] sm:$0xf]
      %v1201 = vld [vmem:[%s1198 + $0x8] sm:$0xf]
      %v1202 = vld [vmem:[%s1198 + $0xc] sm:$0xf]
      %v1203 = vld [vmem:[%s1198 + $0x10] sm:$0xf]
      %v1204 = vld [vmem:[%s1198 + $0x14] sm:$0xf]
      %v1205 = vld [vmem:[%s1198 + $0x18] sm:$0xf]
      %v1206 = vld [vmem:[%s1198 + $0x1c] sm:$0xf]
      %v1207 = vld [vmem:[%s1198 + $0x20] sm:$0xf]
      %v1208 = vld [vmem:[%s1198 + $0x24] sm:$0xf]
      %v1209 = vld [vmem:[%s1198 + $0x28] sm:$0xf]
      %v1210 = vld [vmem:[%s1198 + $0x2c] sm:$0xf]
      %v1211 = vld [vmem:[%s1198 + $0x30] sm:$0xf]
      %v1212 = vld [vmem:[%s1198 + $0x34] sm:$0xf]
      %v1213 = vld [vmem:[%s1198 + $0x38] sm:$0xf]
      %v1214 = vld [vmem:[%s1198 + $0x3c] sm:$0xf]
      %s1215 = scalar_lea.vmem %s3, 3
      %v1216 = vld [vmem:[%s1215] sm:$0x1]
      %v1218 = vlaneseq
      %v1219 = vshrl.u32 %v1218, 7
      %v1220 = vsub.s32 0, %v1219
      %v1221 = vrot.slane %v1216, %v1220
      %v1231 = vunpack.c.l.b16 %v1190
      %v1232 = vunpack.c.l.b16 %v1191
      %v1233 = vunpack.c.l.b16 %v1192
      %v1234 = vunpack.c.l.b16 %v1193
      %v1235 = vunpack.c.l.b16 %v1194
      %v1236 = vunpack.c.l.b16 %v1195
      %v1237 = vunpack.c.l.b16 %v1196
      %v1238 = vunpack.c.l.b16 %v1197
      %v1239 = vpack.c.b16 %v1232, %v1231
      %v1240 = vpack.c.b16 %v1234, %v1233
      %v1241 = vpack.c.b16 %v1236, %v1235
      %v1242 = vpack.c.b16 %v1238, %v1237
      %v1263 = vunpack.c.l.b16 %v1199
      %v1264 = vunpack.c.l.b16 %v1200
      %v1265 = vunpack.c.l.b16 %v1201
      %v1266 = vunpack.c.l.b16 %v1202
      %v1267 = vunpack.c.l.b16 %v1203
      %v1268 = vunpack.c.l.b16 %v1204
      %v1269 = vunpack.c.l.b16 %v1205
      %v1270 = vunpack.c.l.b16 %v1206
      %v1271 = vunpack.c.l.b16 %v1207
      %v1272 = vunpack.c.l.b16 %v1208
      %v1273 = vunpack.c.l.b16 %v1209
      %v1274 = vunpack.c.l.b16 %v1210
      %v1275 = vunpack.c.l.b16 %v1211
      %v1276 = vunpack.c.l.b16 %v1212
      %v1277 = vunpack.c.l.b16 %v1213
      %v1278 = vunpack.c.l.b16 %v1214
      %v1279 = vpack.c.b16 %v1264, %v1263
      %v1280 = vpack.c.b16 %v1266, %v1265
      %v1281 = vpack.c.b16 %v1268, %v1267
      %v1282 = vpack.c.b16 %v1270, %v1269
      %v1283 = vpack.c.b16 %v1272, %v1271
      %v1284 = vpack.c.b16 %v1274, %v1273
      %v1285 = vpack.c.b16 %v1276, %v1275
      %v1286 = vpack.c.b16 %v1278, %v1277
      %1295 = vmatprep.subr.bf16.mxu0 0
      %1296 = vmatpush1.bf16.msra.mxu0 %v1286
      %1297 = vmatprep.subr.bf16.mxu0 0
      %1298 = vmatpush1.bf16.msra.mxu0 %v1285
      %1299 = vmatprep.subr.bf16.mxu0 0
      %1300 = vmatpush1.bf16.msra.mxu0 %v1284
      %1301 = vmatprep.subr.bf16.mxu0 0
      %1302 = vmatpush1.bf16.msra.mxu0 %v1283
      %1303 = vmatprep.subr.bf16.mxu0 0
      %1304 = vmatpush1.bf16.msra.mxu0 %v1282
      %1305 = vmatprep.subr.bf16.mxu0 0
      %1306 = vmatpush1.bf16.msra.mxu0 %v1281
      %1307 = vmatprep.subr.bf16.mxu0 0
      %1308 = vmatpush1.bf16.msra.mxu0 %v1280
      %1309 = vmatprep.subr.bf16.mxu0 0
      %1310 = vmatpush1.bf16.msra.mxu0 %v1279
      %1311 = vmatprep.subr.bf16.mxu0 0
      %1312 = vmatpush2.bf16.msra.mxu0 0
      %1313 = vmatprep.subr.bf16.mxu0 0
      %1314 = vmatpush2.bf16.msra.mxu0 0
      %1315 = vmatprep.subr.bf16.mxu0 0
      %1316 = vmatpush2.bf16.msra.mxu0 0
      %1317 = vmatprep.subr.bf16.mxu0 0
      %1318 = vmatpush2.bf16.msra.mxu0 0
      %1319 = vmatprep.subr.bf16.mxu0 0
      %1320 = vmatpush2.bf16.msra.mxu0 0
      %1321 = vmatprep.subr.bf16.mxu0 0
      %1322 = vmatpush2.bf16.msra.mxu0 0
      %1323 = vmatprep.subr.bf16.mxu0 0
      %1324 = vmatpush2.bf16.msra.mxu0 0
      %1325 = vmatprep.subr.bf16.mxu0 0
      %1326 = vmatpush2.bf16.msra.mxu0 0
      %1327 = vmatprep.mubr.bf16.mxu0 0
      %1328 = vmatmul.mubr.bf16.gmra.mxu0 %v1239
      %v1329 = vpop.f32.mrf.mxu0
      %v1330 = vadd.f32 %v1221, %v1329
      %v1331 = vpop.f32.mrf.mxu0
      %v1332 = vpop.f32.mrf.mxu0
      %v1333 = vadd.f32 %v1221, %v1332
      %v1334 = vpop.f32.mrf.mxu0
      %1335 = vmatprep.mubr.bf16.mxu0 0
      %1336 = vmatmul.mubr.bf16.gmra.mxu0 %v1240
      %v1337 = vpop.f32.mrf.mxu0
      %v1338 = vadd.f32 %v1221, %v1337
      %v1339 = vpop.f32.mrf.mxu0
      %v1340 = vpop.f32.mrf.mxu0
      %v1341 = vadd.f32 %v1221, %v1340
      %v1342 = vpop.f32.mrf.mxu0
      %1343 = vmatprep.mubr.bf16.mxu0 0
      %1344 = vmatmul.mubr.bf16.gmra.mxu0 %v1241
      %v1345 = vpop.f32.mrf.mxu0
      %v1346 = vadd.f32 %v1221, %v1345
      %v1347 = vpop.f32.mrf.mxu0
      %v1348 = vpop.f32.mrf.mxu0
      %v1349 = vadd.f32 %v1221, %v1348
      %v1350 = vpop.f32.mrf.mxu0
      %1351 = vmatprep.mubr.bf16.mxu0 0
      %1352 = vmatmul.mubr.bf16.gmra.mxu0 %v1242
      %v1353 = vpop.f32.mrf.mxu0
      %v1354 = vadd.f32 %v1221, %v1353
      %v1355 = vpop.f32.mrf.mxu0
      %v1356 = vpop.f32.mrf.mxu0
      %v1357 = vadd.f32 %v1221, %v1356
      %v1358 = vpop.f32.mrf.mxu0
      %1359 = vdwg.mxu0
      %v1360 = vmax.f32 %v1330, 0.0
      %v1361 = vmax.f32 %v1333, 0.0
      %v1362 = vmax.f32 %v1338, 0.0
      %v1363 = vmax.f32 %v1341, 0.0
      %v1364 = vmax.f32 %v1346, 0.0
      %v1365 = vmax.f32 %v1349, 0.0
      %v1366 = vmax.f32 %v1354, 0.0
      %v1367 = vmax.f32 %v1357, 0.0
      %v1368 = vpack.c.bf16 %v1361, %v1360
      %v1369 = vpack.c.bf16 %v1363, %v1362
      %v1370 = vpack.c.bf16 %v1365, %v1364
      %v1371 = vpack.c.bf16 %v1367, %v1366
      %v1376 = vunpack.c.l.b16 %v1368
      %v1377 = vunpack.c.h.b16 %v1368
      %v1378 = vunpack.c.l.b16 %v1369
      %v1379 = vunpack.c.h.b16 %v1369
      %v1380 = vunpack.c.l.b16 %v1370
      %v1381 = vunpack.c.h.b16 %v1370
      %v1382 = vunpack.c.l.b16 %v1371
      %v1383 = vunpack.c.h.b16 %v1371
      %v1384 = vpack.c.b16 %v1376, %v1376
      %v1385 = vpack.c.b16 %v1377, %v1377
      %v1386 = vpack.c.b16 %v1378, %v1378
      %v1387 = vpack.c.b16 %v1379, %v1379
      %v1388 = vpack.c.b16 %v1380, %v1380
      %v1389 = vpack.c.b16 %v1381, %v1381
      %v1390 = vpack.c.b16 %v1382, %v1382
      %v1391 = vpack.c.b16 %v1383, %v1383
      %v1393 = vshrl.u32 %v1384, 16
      %v1395 = vrot.slane %v1393, 7
      %v1396 = vshll.u32 %v1384, 16
      %v1398 = vor.u32 %v1395, %v1396
      %v1399 = vrot.slane %v1395, 4
      %v1401 = vshrl.u32 %v1385, 16
      %v1403 = vrot.slane %v1401, 7
      %v1404 = vshll.u32 %v1385, 16
      %v1406 = vor.u32 %v1403, %v1404
      %v1407 = vrot.slane %v1403, 4
      %v1409 = vshrl.u32 %v1386, 16
      %v1411 = vrot.slane %v1409, 7
      %v1412 = vshll.u32 %v1386, 16
      %v1414 = vor.u32 %v1411, %v1412
      %v1415 = vrot.slane %v1411, 4
      %v1417 = vshrl.u32 %v1387, 16
      %v1419 = vrot.slane %v1417, 7
      %v1420 = vshll.u32 %v1387, 16
      %v1422 = vor.u32 %v1419, %v1420
      %v1423 = vrot.slane %v1419, 4
      %v1425 = vshrl.u32 %v1388, 16
      %v1427 = vrot.slane %v1425, 7
      %v1428 = vshll.u32 %v1388, 16
      %v1430 = vor.u32 %v1427, %v1428
      %v1431 = vrot.slane %v1427, 4
      %v1433 = vshrl.u32 %v1389, 16
      %v1435 = vrot.slane %v1433, 7
      %v1436 = vshll.u32 %v1389, 16
      %v1438 = vor.u32 %v1435, %v1436
      %v1439 = vrot.slane %v1435, 4
      %v1441 = vshrl.u32 %v1390, 16
      %v1443 = vrot.slane %v1441, 7
      %v1444 = vshll.u32 %v1390, 16
      %v1446 = vor.u32 %v1443, %v1444
      %v1447 = vrot.slane %v1443, 4
      %v1449 = vshrl.u32 %v1391, 16
      %v1451 = vrot.slane %v1449, 7
      %v1452 = vshll.u32 %v1391, 16
      %v1454 = vor.u32 %v1451, %v1452
      %v1455 = vrot.slane %v1451, 4
      %s1472 = scalar_lea.vmem [#allocation2], 8
      %v1473 = vld [vmem:[%s1472] sm:$0xf]
      %v1474 = vsel %vm922, %v1398, %v1473
      %1475 = vst [vmem:[%s1472] sm:$0xf] %v1474
      %v1476 = vld [vmem:[%s1472 + $0x4] sm:$0x1]
      %v1477 = vsel %vm276, %v1399, %v1476
      %1478 = vst [vmem:[%s1472 + $0x4] sm:$0x1] %v1477
      %v1479 = vld [vmem:[%s1472 + $0x8] sm:$0xf]
      %v1480 = vsel %vm922, %v1406, %v1479
      %1481 = vst [vmem:[%s1472 + $0x8] sm:$0xf] %v1480
      %v1482 = vld [vmem:[%s1472 + $0xc] sm:$0x1]
      %v1483 = vsel %vm276, %v1407, %v1482
      %1484 = vst [vmem:[%s1472 + $0xc] sm:$0x1] %v1483
      %v1485 = vld [vmem:[%s1472 + $0x10] sm:$0xf]
      %v1486 = vsel %vm922, %v1414, %v1485
      %1487 = vst [vmem:[%s1472 + $0x10] sm:$0xf] %v1486
      %v1488 = vld [vmem:[%s1472 + $0x14] sm:$0x1]
      %v1489 = vsel %vm276, %v1415, %v1488
      %1490 = vst [vmem:[%s1472 + $0x14] sm:$0x1] %v1489
      %v1491 = vld [vmem:[%s1472 + $0x18] sm:$0xf]
      %v1492 = vsel %vm922, %v1422, %v1491
      %1493 = vst [vmem:[%s1472 + $0x18] sm:$0xf] %v1492
      %v1494 = vld [vmem:[%s1472 + $0x1c] sm:$0x1]
      %v1495 = vsel %vm276, %v1423, %v1494
      %1496 = vst [vmem:[%s1472 + $0x1c] sm:$0x1] %v1495
      %v1497 = vld [vmem:[%s1472 + $0x20] sm:$0xf]
      %v1498 = vsel %vm922, %v1430, %v1497
      %1499 = vst [vmem:[%s1472 + $0x20] sm:$0xf] %v1498
      %v1500 = vld [vmem:[%s1472 + $0x24] sm:$0x1]
      %v1501 = vsel %vm276, %v1431, %v1500
      %1502 = vst [vmem:[%s1472 + $0x24] sm:$0x1] %v1501
      %v1503 = vld [vmem:[%s1472 + $0x28] sm:$0xf]
      %v1504 = vsel %vm922, %v1438, %v1503
      %1505 = vst [vmem:[%s1472 + $0x28] sm:$0xf] %v1504
      %v1506 = vld [vmem:[%s1472 + $0x2c] sm:$0x1]
      %v1507 = vsel %vm276, %v1439, %v1506
      %1508 = vst [vmem:[%s1472 + $0x2c] sm:$0x1] %v1507
      %v1509 = vld [vmem:[%s1472 + $0x30] sm:$0xf]
      %v1510 = vsel %vm922, %v1446, %v1509
      %1511 = vst [vmem:[%s1472 + $0x30] sm:$0xf] %v1510
      %v1512 = vld [vmem:[%s1472 + $0x34] sm:$0x1]
      %v1513 = vsel %vm276, %v1447, %v1512
      %1514 = vst [vmem:[%s1472 + $0x34] sm:$0x1] %v1513
      %v1515 = vld [vmem:[%s1472 + $0x38] sm:$0xf]
      %v1516 = vsel %vm922, %v1454, %v1515
      %1517 = vst [vmem:[%s1472 + $0x38] sm:$0xf] %v1516
      %v1518 = vld [vmem:[%s1472 + $0x3c] sm:$0x1]
      %v1519 = vsel %vm276, %v1455, %v1518
      %1520 = vst [vmem:[%s1472 + $0x3c] sm:$0x1] %v1519
      %v1521 = vlaneseq
      %v1522 = vand.u32 %v1521, 127
      %v1523 = vld [vmem:[%s266] sm:$0xf]
      %v1524 = vld [vmem:[%s266 + $0x4] sm:$0xf]
      %v1525 = vld [vmem:[%s266 + $0x8] sm:$0xf]
      %v1526 = vld [vmem:[%s266 + $0xc] sm:$0xf]
      %v1527 = vld [vmem:[%s266 + $0x10] sm:$0xf]
      %v1528 = vld [vmem:[%s266 + $0x14] sm:$0xf]
      %v1529 = vld [vmem:[%s266 + $0x18] sm:$0xf]
      %v1530 = vld [vmem:[%s266 + $0x1c] sm:$0xf]
      %v1531 = vld [vmem:[#allocation2] sm:$0xf]
      %v1532 = vld [vmem:[#allocation2 + $0x8] sm:$0xf]
      %v1533 = vld [vmem:[#allocation2 + $0x10] sm:$0xf]
      %v1534 = vld [vmem:[#allocation2 + $0x18] sm:$0xf]
      %v1535 = vld [vmem:[#allocation2 + $0x20] sm:$0xf]
      %v1536 = vld [vmem:[#allocation2 + $0x28] sm:$0xf]
      %v1537 = vld [vmem:[#allocation2 + $0x30] sm:$0xf]
      %v1538 = vld [vmem:[#allocation2 + $0x38] sm:$0xf]
      %vm1539 = vcmp.ge.s32.totalorder %v1522, 0
      %vm1540 = vcmp.lt.s32.totalorder %v1522, 8
      %vm1541 = vmand %vm1539, %vm1540
      %vm1542 = vmpackc.low %vm1541, %vm1541
      %v1543 = vsel %vm1542, %v1531, 0
      %v1544 = vsel %vm1542, %v1532, 0
      %v1545 = vsel %vm1542, %v1533, 0
      %v1546 = vsel %vm1542, %v1534, 0
      %v1547 = vsel %vm1542, %v1535, 0
      %v1548 = vsel %vm1542, %v1536, 0
      %v1549 = vsel %vm1542, %v1537, 0
      %v1550 = vsel %vm1542, %v1538, 0
      %v1551 = vadd.bf16 %v1523, %v1543
      %v1552 = vadd.bf16 %v1524, %v1544
      %v1553 = vadd.bf16 %v1525, %v1545
      %v1554 = vadd.bf16 %v1526, %v1546
      %v1555 = vadd.bf16 %v1527, %v1547
      %v1556 = vadd.bf16 %v1528, %v1548
      %v1557 = vadd.bf16 %v1529, %v1549
      %v1558 = vadd.bf16 %v1530, %v1550
      %s1559 = scalar_lea.vmem [#allocation2], 72
      %v1560 = vld [vmem:[%s1559] sm:$0xf]
      %v1561 = vld [vmem:[%s1559 + $0x8] sm:$0xf]
      %v1562 = vld [vmem:[%s1559 + $0x10] sm:$0xf]
      %v1563 = vld [vmem:[%s1559 + $0x18] sm:$0xf]
      %v1564 = vld [vmem:[%s1559 + $0x20] sm:$0xf]
      %v1565 = vld [vmem:[%s1559 + $0x28] sm:$0xf]
      %v1566 = vld [vmem:[%s1559 + $0x30] sm:$0xf]
      %v1567 = vld [vmem:[%s1559 + $0x38] sm:$0xf]
      %vm1568 = vcmp.ge.s32.totalorder %v1522, 8
      %vm1569 = vcmp.lt.s32.totalorder %v1522, 16
      %vm1570 = vmand %vm1568, %vm1569
      %vm1571 = vmpackc.low %vm1570, %vm1570
      %v1572 = vsel %vm1571, %v1560, 0
      %v1573 = vsel %vm1571, %v1561, 0
      %v1574 = vsel %vm1571, %v1562, 0
      %v1575 = vsel %vm1571, %v1563, 0
      %v1576 = vsel %vm1571, %v1564, 0
      %v1577 = vsel %vm1571, %v1565, 0
      %v1578 = vsel %vm1571, %v1566, 0
      %v1579 = vsel %vm1571, %v1567, 0
      %v1580 = vadd.bf16 %v1551, %v1572
      %v1581 = vadd.bf16 %v1552, %v1573
      %v1582 = vadd.bf16 %v1553, %v1574
      %v1583 = vadd.bf16 %v1554, %v1575
      %v1584 = vadd.bf16 %v1555, %v1576
      %v1585 = vadd.bf16 %v1556, %v1577
      %v1586 = vadd.bf16 %v1557, %v1578
      %v1587 = vadd.bf16 %v1558, %v1579
      %v1588 = vld [vmem:[#allocation2 + $0x4] sm:$0x1]
      %v1589 = vld [vmem:[#allocation2 + $0xc] sm:$0x1]
      %v1590 = vld [vmem:[#allocation2 + $0x14] sm:$0x1]
      %v1591 = vld [vmem:[#allocation2 + $0x1c] sm:$0x1]
      %v1592 = vld [vmem:[#allocation2 + $0x24] sm:$0x1]
      %v1593 = vld [vmem:[#allocation2 + $0x2c] sm:$0x1]
      %v1594 = vld [vmem:[#allocation2 + $0x34] sm:$0x1]
      %v1595 = vld [vmem:[#allocation2 + $0x3c] sm:$0x1]
      %vm1596 = vsmask.f32 3328
      %vm1597 = vsmask.f32 7440
      %vm1598 = vmor %vm1596, %vm1597
      %v1600 = vshrl.u32 %v1531, 16
      %v1602 = vrot.slane %v1600, 4
      %v1603 = vshll.u32 %v1531, 16
      %v1605 = vrot.slane %v1603, 5
      %v1606 = vor.u32 %v1602, %v1605
      %v1607 = vrot.slane %v1606, 4
      %v1609 = vshll.u32 %v1588, 16
      %v1611 = vrot.slane %v1609, 5
      %v1612 = vsel %vm1598, %v1607, %v1611
      %v1614 = vshrl.u32 %v1532, 16
      %v1616 = vrot.slane %v1614, 4
      %v1617 = vshll.u32 %v1532, 16
      %v1619 = vrot.slane %v1617, 5
      %v1620 = vor.u32 %v1616, %v1619
      %v1621 = vrot.slane %v1620, 4
      %v1623 = vshll.u32 %v1589, 16
      %v1625 = vrot.slane %v1623, 5
      %v1626 = vsel %vm1598, %v1621, %v1625
      %v1628 = vshrl.u32 %v1533, 16
      %v1630 = vrot.slane %v1628, 4
      %v1631 = vshll.u32 %v1533, 16
      %v1633 = vrot.slane %v1631, 5
      %v1634 = vor.u32 %v1630, %v1633
      %v1635 = vrot.slane %v1634, 4
      %v1637 = vshll.u32 %v1590, 16
      %v1639 = vrot.slane %v1637, 5
      %v1640 = vsel %vm1598, %v1635, %v1639
      %v1642 = vshrl.u32 %v1534, 16
      %v1644 = vrot.slane %v1642, 4
      %v1645 = vshll.u32 %v1534, 16
      %v1647 = vrot.slane %v1645, 5
      %v1648 = vor.u32 %v1644, %v1647
      %v1649 = vrot.slane %v1648, 4
      %v1651 = vshll.u32 %v1591, 16
      %v1653 = vrot.slane %v1651, 5
      %v1654 = vsel %vm1598, %v1649, %v1653
      %v1656 = vshrl.u32 %v1535, 16
      %v1658 = vrot.slane %v1656, 4
      %v1659 = vshll.u32 %v1535, 16
      %v1661 = vrot.slane %v1659, 5
      %v1662 = vor.u32 %v1658, %v1661
      %v1663 = vrot.slane %v1662, 4
      %v1665 = vshll.u32 %v1592, 16
      %v1667 = vrot.slane %v1665, 5
      %v1668 = vsel %vm1598, %v1663, %v1667
      %v1670 = vshrl.u32 %v1536, 16
      %v1672 = vrot.slane %v1670, 4
      %v1673 = vshll.u32 %v1536, 16
      %v1675 = vrot.slane %v1673, 5
      %v1676 = vor.u32 %v1672, %v1675
      %v1677 = vrot.slane %v1676, 4
      %v1679 = vshll.u32 %v1593, 16
      %v1681 = vrot.slane %v1679, 5
      %v1682 = vsel %vm1598, %v1677, %v1681
      %v1684 = vshrl.u32 %v1537, 16
      %v1686 = vrot.slane %v1684, 4
      %v1687 = vshll.u32 %v1537, 16
      %v1689 = vrot.slane %v1687, 5
      %v1690 = vor.u32 %v1686, %v1689
      %v1691 = vrot.slane %v1690, 4
      %v1693 = vshll.u32 %v1594, 16
      %v1695 = vrot.slane %v1693, 5
      %v1696 = vsel %vm1598, %v1691, %v1695
      %v1698 = vshrl.u32 %v1538, 16
      %v1700 = vrot.slane %v1698, 4
      %v1701 = vshll.u32 %v1538, 16
      %v1703 = vrot.slane %v1701, 5
      %v1704 = vor.u32 %v1700, %v1703
      %v1705 = vrot.slane %v1704, 4
      %v1707 = vshll.u32 %v1595, 16
      %v1709 = vrot.slane %v1707, 5
      %v1710 = vsel %vm1598, %v1705, %v1709
      %vm1719 = vcmp.ge.s32.totalorder %v1522, 16
      %vm1720 = vcmp.lt.s32.totalorder %v1522, 24
      %vm1721 = vmand %vm1719, %vm1720
      %vm1722 = vmpackc.low %vm1721, %vm1721
      %v1723 = vsel %vm1722, %v1612, 0
      %v1724 = vsel %vm1722, %v1626, 0
      %v1725 = vsel %vm1722, %v1640, 0
      %v1726 = vsel %vm1722, %v1654, 0
      %v1727 = vsel %vm1722, %v1668, 0
      %v1728 = vsel %vm1722, %v1682, 0
      %v1729 = vsel %vm1722, %v1696, 0
      %v1730 = vsel %vm1722, %v1710, 0
      %v1731 = vadd.bf16 %v1580, %v1723
      %v1732 = vadd.bf16 %v1581, %v1724
      %v1733 = vadd.bf16 %v1582, %v1725
      %v1734 = vadd.bf16 %v1583, %v1726
      %v1735 = vadd.bf16 %v1584, %v1727
      %v1736 = vadd.bf16 %v1585, %v1728
      %v1737 = vadd.bf16 %v1586, %v1729
      %v1738 = vadd.bf16 %v1587, %v1730
      %v1739 = vld [vmem:[%s919] sm:$0xf]
      %v1740 = vld [vmem:[%s919 + $0x8] sm:$0xf]
      %v1741 = vld [vmem:[%s919 + $0x10] sm:$0xf]
      %v1742 = vld [vmem:[%s919 + $0x18] sm:$0xf]
      %v1743 = vld [vmem:[%s919 + $0x20] sm:$0xf]
      %v1744 = vld [vmem:[%s919 + $0x28] sm:$0xf]
      %v1745 = vld [vmem:[%s919 + $0x30] sm:$0xf]
      %v1746 = vld [vmem:[%s919 + $0x38] sm:$0xf]
      %vm1747 = vcmp.ge.s32.totalorder %v1522, 24
      %vm1748 = vcmp.lt.s32.totalorder %v1522, 32
      %vm1749 = vmand %vm1747, %vm1748
      %vm1750 = vmpackc.low %vm1749, %vm1749
      %v1751 = vsel %vm1750, %v1739, 0
      %v1752 = vsel %vm1750, %v1740, 0
      %v1753 = vsel %vm1750, %v1741, 0
      %v1754 = vsel %vm1750, %v1742, 0
      %v1755 = vsel %vm1750, %v1743, 0
      %v1756 = vsel %vm1750, %v1744, 0
      %v1757 = vsel %vm1750, %v1745, 0
      %v1758 = vsel %vm1750, %v1746, 0
      %v1759 = vadd.bf16 %v1731, %v1751
      %v1760 = vadd.bf16 %v1732, %v1752
      %v1761 = vadd.bf16 %v1733, %v1753
      %v1762 = vadd.bf16 %v1734, %v1754
      %v1763 = vadd.bf16 %v1735, %v1755
      %v1764 = vadd.bf16 %v1736, %v1756
      %v1765 = vadd.bf16 %v1737, %v1757
      %v1766 = vadd.bf16 %v1738, %v1758
      %v1767 = vld [vmem:[%s628] sm:$0xf]
      %v1768 = vld [vmem:[%s628 + $0x8] sm:$0xf]
      %v1769 = vld [vmem:[%s628 + $0x10] sm:$0xf]
      %v1770 = vld [vmem:[%s628 + $0x18] sm:$0xf]
      %v1771 = vld [vmem:[%s628 + $0x20] sm:$0xf]
      %v1772 = vld [vmem:[%s628 + $0x28] sm:$0xf]
      %v1773 = vld [vmem:[%s628 + $0x30] sm:$0xf]
      %v1774 = vld [vmem:[%s628 + $0x38] sm:$0xf]
      %vm1775 = vcmp.ge.s32.totalorder %v1522, 32
      %vm1776 = vcmp.lt.s32.totalorder %v1522, 40
      %vm1777 = vmand %vm1775, %vm1776
      %vm1778 = vmpackc.low %vm1777, %vm1777
      %v1779 = vsel %vm1778, %v1767, 0
      %v1780 = vsel %vm1778, %v1768, 0
      %v1781 = vsel %vm1778, %v1769, 0
      %v1782 = vsel %vm1778, %v1770, 0
      %v1783 = vsel %vm1778, %v1771, 0
      %v1784 = vsel %vm1778, %v1772, 0
      %v1785 = vsel %vm1778, %v1773, 0
      %v1786 = vsel %vm1778, %v1774, 0
      %v1787 = vadd.bf16 %v1759, %v1779
      %v1788 = vadd.bf16 %v1760, %v1780
      %v1789 = vadd.bf16 %v1761, %v1781
      %v1790 = vadd.bf16 %v1762, %v1782
      %v1791 = vadd.bf16 %v1763, %v1783
      %v1792 = vadd.bf16 %v1764, %v1784
      %v1793 = vadd.bf16 %v1765, %v1785
      %v1794 = vadd.bf16 %v1766, %v1786
      %v1795 = vld [vmem:[%s919 + $0x4] sm:$0x1]
      %v1796 = vld [vmem:[%s919 + $0xc] sm:$0x1]
      %v1797 = vld [vmem:[%s919 + $0x14] sm:$0x1]
      %v1798 = vld [vmem:[%s919 + $0x1c] sm:$0x1]
      %v1799 = vld [vmem:[%s919 + $0x24] sm:$0x1]
      %v1800 = vld [vmem:[%s919 + $0x2c] sm:$0x1]
      %v1801 = vld [vmem:[%s919 + $0x34] sm:$0x1]
      %v1802 = vld [vmem:[%s919 + $0x3c] sm:$0x1]
      %v1804 = vshrl.u32 %v1739, 16
      %v1806 = vrot.slane %v1804, 4
      %v1807 = vshll.u32 %v1739, 16
      %v1809 = vrot.slane %v1807, 5
      %v1810 = vor.u32 %v1806, %v1809
      %v1811 = vrot.slane %v1810, 4
      %v1813 = vshll.u32 %v1795, 16
      %v1815 = vrot.slane %v1813, 5
      %v1816 = vsel %vm1598, %v1811, %v1815
      %v1818 = vshrl.u32 %v1740, 16
      %v1820 = vrot.slane %v1818, 4
      %v1821 = vshll.u32 %v1740, 16
      %v1823 = vrot.slane %v1821, 5
      %v1824 = vor.u32 %v1820, %v1823
      %v1825 = vrot.slane %v1824, 4
      %v1827 = vshll.u32 %v1796, 16
      %v1829 = vrot.slane %v1827, 5
      %v1830 = vsel %vm1598, %v1825, %v1829
      %v1832 = vshrl.u32 %v1741, 16
      %v1834 = vrot.slane %v1832, 4
      %v1835 = vshll.u32 %v1741, 16
      %v1837 = vrot.slane %v1835, 5
      %v1838 = vor.u32 %v1834, %v1837
      %v1839 = vrot.slane %v1838, 4
      %v1841 = vshll.u32 %v1797, 16
      %v1843 = vrot.slane %v1841, 5
      %v1844 = vsel %vm1598, %v1839, %v1843
      %v1846 = vshrl.u32 %v1742, 16
      %v1848 = vrot.slane %v1846, 4
      %v1849 = vshll.u32 %v1742, 16
      %v1851 = vrot.slane %v1849, 5
      %v1852 = vor.u32 %v1848, %v1851
      %v1853 = vrot.slane %v1852, 4
      %v1855 = vshll.u32 %v1798, 16
      %v1857 = vrot.slane %v1855, 5
      %v1858 = vsel %vm1598, %v1853, %v1857
      %v1860 = vshrl.u32 %v1743, 16
      %v1862 = vrot.slane %v1860, 4
      %v1863 = vshll.u32 %v1743, 16
      %v1865 = vrot.slane %v1863, 5
      %v1866 = vor.u32 %v1862, %v1865
      %v1867 = vrot.slane %v1866, 4
      %v1869 = vshll.u32 %v1799, 16
      %v1871 = vrot.slane %v1869, 5
      %v1872 = vsel %vm1598, %v1867, %v1871
      %v1874 = vshrl.u32 %v1744, 16
      %v1876 = vrot.slane %v1874, 4
      %v1877 = vshll.u32 %v1744, 16
      %v1879 = vrot.slane %v1877, 5
      %v1880 = vor.u32 %v1876, %v1879
      %v1881 = vrot.slane %v1880, 4
      %v1883 = vshll.u32 %v1800, 16
      %v1885 = vrot.slane %v1883, 5
      %v1886 = vsel %vm1598, %v1881, %v1885
      %v1888 = vshrl.u32 %v1745, 16
      %v1890 = vrot.slane %v1888, 4
      %v1891 = vshll.u32 %v1745, 16
      %v1893 = vrot.slane %v1891, 5
      %v1894 = vor.u32 %v1890, %v1893
      %v1895 = vrot.slane %v1894, 4
      %v1897 = vshll.u32 %v1801, 16
      %v1899 = vrot.slane %v1897, 5
      %v1900 = vsel %vm1598, %v1895, %v1899
      %v1902 = vshrl.u32 %v1746, 16
      %v1904 = vrot.slane %v1902, 4
      %v1905 = vshll.u32 %v1746, 16
      %v1907 = vrot.slane %v1905, 5
      %v1908 = vor.u32 %v1904, %v1907
      %v1909 = vrot.slane %v1908, 4
      %v1911 = vshll.u32 %v1802, 16
      %v1913 = vrot.slane %v1911, 5
      %v1914 = vsel %vm1598, %v1909, %v1913
      %vm1923 = vcmp.ge.s32.totalorder %v1522, 40
      %vm1924 = vcmp.lt.s32.totalorder %v1522, 48
      %vm1925 = vmand %vm1923, %vm1924
      %vm1926 = vmpackc.low %vm1925, %vm1925
      %v1927 = vsel %vm1926, %v1816, 0
      %v1928 = vsel %vm1926, %v1830, 0
      %v1929 = vsel %vm1926, %v1844, 0
      %v1930 = vsel %vm1926, %v1858, 0
      %v1931 = vsel %vm1926, %v1872, 0
      %v1932 = vsel %vm1926, %v1886, 0
      %v1933 = vsel %vm1926, %v1900, 0
      %v1934 = vsel %vm1926, %v1914, 0
      %v1935 = vadd.bf16 %v1787, %v1927
      %v1936 = vadd.bf16 %v1788, %v1928
      %v1937 = vadd.bf16 %v1789, %v1929
      %v1938 = vadd.bf16 %v1790, %v1930
      %v1939 = vadd.bf16 %v1791, %v1931
      %v1940 = vadd.bf16 %v1792, %v1932
      %v1941 = vadd.bf16 %v1793, %v1933
      %v1942 = vadd.bf16 %v1794, %v1934
      %v1943 = vld [vmem:[%s1472] sm:$0xf]
      %v1944 = vld [vmem:[%s1472 + $0x8] sm:$0xf]
      %v1945 = vld [vmem:[%s1472 + $0x10] sm:$0xf]
      %v1946 = vld [vmem:[%s1472 + $0x18] sm:$0xf]
      %v1947 = vld [vmem:[%s1472 + $0x20] sm:$0xf]
      %v1948 = vld [vmem:[%s1472 + $0x28] sm:$0xf]
      %v1949 = vld [vmem:[%s1472 + $0x30] sm:$0xf]
      %v1950 = vld [vmem:[%s1472 + $0x38] sm:$0xf]
      %vm1951 = vcmp.ge.s32.totalorder %v1522, 48
      %vm1952 = vcmp.lt.s32.totalorder %v1522, 56
      %vm1953 = vmand %vm1951, %vm1952
      %vm1954 = vmpackc.low %vm1953, %vm1953
      %v1955 = vsel %vm1954, %v1943, 0
      %v1956 = vsel %vm1954, %v1944, 0
      %v1957 = vsel %vm1954, %v1945, 0
      %v1958 = vsel %vm1954, %v1946, 0
      %v1959 = vsel %vm1954, %v1947, 0
      %v1960 = vsel %vm1954, %v1948, 0
      %v1961 = vsel %vm1954, %v1949, 0
      %v1962 = vsel %vm1954, %v1950, 0
      %v1963 = vadd.bf16 %v1935, %v1955
      %v1964 = vadd.bf16 %v1936, %v1956
      %v1965 = vadd.bf16 %v1937, %v1957
      %v1966 = vadd.bf16 %v1938, %v1958
      %v1967 = vadd.bf16 %v1939, %v1959
      %v1968 = vadd.bf16 %v1940, %v1960
      %v1969 = vadd.bf16 %v1941, %v1961
      %v1970 = vadd.bf16 %v1942, %v1962
      %v1971 = vld [vmem:[%s1181] sm:$0xf]
      %v1972 = vld [vmem:[%s1181 + $0x8] sm:$0xf]
      %v1973 = vld [vmem:[%s1181 + $0x10] sm:$0xf]
      %v1974 = vld [vmem:[%s1181 + $0x18] sm:$0xf]
      %v1975 = vld [vmem:[%s1181 + $0x20] sm:$0xf]
      %v1976 = vld [vmem:[%s1181 + $0x28] sm:$0xf]
      %v1977 = vld [vmem:[%s1181 + $0x30] sm:$0xf]
      %v1978 = vld [vmem:[%s1181 + $0x38] sm:$0xf]
      %vm1979 = vcmp.ge.s32.totalorder %v1522, 56
      %vm1980 = vcmp.lt.s32.totalorder %v1522, 64
      %vm1981 = vmand %vm1979, %vm1980
      %vm1982 = vmpackc.low %vm1981, %vm1981
      %v1983 = vsel %vm1982, %v1971, 0
      %v1984 = vsel %vm1982, %v1972, 0
      %v1985 = vsel %vm1982, %v1973, 0
      %v1986 = vsel %vm1982, %v1974, 0
      %v1987 = vsel %vm1982, %v1975, 0
      %v1988 = vsel %vm1982, %v1976, 0
      %v1989 = vsel %vm1982, %v1977, 0
      %v1990 = vsel %vm1982, %v1978, 0
      %v1991 = vadd.bf16 %v1963, %v1983
      %v1992 = vadd.bf16 %v1964, %v1984
      %v1993 = vadd.bf16 %v1965, %v1985
      %v1994 = vadd.bf16 %v1966, %v1986
      %v1995 = vadd.bf16 %v1967, %v1987
      %v1996 = vadd.bf16 %v1968, %v1988
      %v1997 = vadd.bf16 %v1969, %v1989
      %v1998 = vadd.bf16 %v1970, %v1990
      %v1999 = vld [vmem:[%s1472 + $0x4] sm:$0x1]
      %v2000 = vld [vmem:[%s1472 + $0xc] sm:$0x1]
      %v2001 = vld [vmem:[%s1472 + $0x14] sm:$0x1]
      %v2002 = vld [vmem:[%s1472 + $0x1c] sm:$0x1]
      %v2003 = vld [vmem:[%s1472 + $0x24] sm:$0x1]
      %v2004 = vld [vmem:[%s1472 + $0x2c] sm:$0x1]
      %v2005 = vld [vmem:[%s1472 + $0x34] sm:$0x1]
      %v2006 = vld [vmem:[%s1472 + $0x3c] sm:$0x1]
      %v2008 = vshrl.u32 %v1943, 16
      %v2010 = vrot.slane %v2008, 4
      %v2011 = vshll.u32 %v1943, 16
      %v2013 = vrot.slane %v2011, 5
      %v2014 = vor.u32 %v2010, %v2013
      %v2015 = vrot.slane %v2014, 4
      %v2017 = vshll.u32 %v1999, 16
      %v2019 = vrot.slane %v2017, 5
      %v2020 = vsel %vm1598, %v2015, %v2019
      %v2022 = vshrl.u32 %v1944, 16
      %v2024 = vrot.slane %v2022, 4
      %v2025 = vshll.u32 %v1944, 16
      %v2027 = vrot.slane %v2025, 5
      %v2028 = vor.u32 %v2024, %v2027
      %v2029 = vrot.slane %v2028, 4
      %v2031 = vshll.u32 %v2000, 16
      %v2033 = vrot.slane %v2031, 5
      %v2034 = vsel %vm1598, %v2029, %v2033
      %v2036 = vshrl.u32 %v1945, 16
      %v2038 = vrot.slane %v2036, 4
      %v2039 = vshll.u32 %v1945, 16
      %v2041 = vrot.slane %v2039, 5
      %v2042 = vor.u32 %v2038, %v2041
      %v2043 = vrot.slane %v2042, 4
      %v2045 = vshll.u32 %v2001, 16
      %v2047 = vrot.slane %v2045, 5
      %v2048 = vsel %vm1598, %v2043, %v2047
      %v2050 = vshrl.u32 %v1946, 16
      %v2052 = vrot.slane %v2050, 4
      %v2053 = vshll.u32 %v1946, 16
      %v2055 = vrot.slane %v2053, 5
      %v2056 = vor.u32 %v2052, %v2055
      %v2057 = vrot.slane %v2056, 4
      %v2059 = vshll.u32 %v2002, 16
      %v2061 = vrot.slane %v2059, 5
      %v2062 = vsel %vm1598, %v2057, %v2061
      %v2064 = vshrl.u32 %v1947, 16
      %v2066 = vrot.slane %v2064, 4
      %v2067 = vshll.u32 %v1947, 16
      %v2069 = vrot.slane %v2067, 5
      %v2070 = vor.u32 %v2066, %v2069
      %v2071 = vrot.slane %v2070, 4
      %v2073 = vshll.u32 %v2003, 16
      %v2075 = vrot.slane %v2073, 5
      %v2076 = vsel %vm1598, %v2071, %v2075
      %v2078 = vshrl.u32 %v1948, 16
      %v2080 = vrot.slane %v2078, 4
      %v2081 = vshll.u32 %v1948, 16
      %v2083 = vrot.slane %v2081, 5
      %v2084 = vor.u32 %v2080, %v2083
      %v2085 = vrot.slane %v2084, 4
      %v2087 = vshll.u32 %v2004, 16
      %v2089 = vrot.slane %v2087, 5
      %v2090 = vsel %vm1598, %v2085, %v2089
      %v2092 = vshrl.u32 %v1949, 16
      %v2094 = vrot.slane %v2092, 4
      %v2095 = vshll.u32 %v1949, 16
      %v2097 = vrot.slane %v2095, 5
      %v2098 = vor.u32 %v2094, %v2097
      %v2099 = vrot.slane %v2098, 4
      %v2101 = vshll.u32 %v2005, 16
      %v2103 = vrot.slane %v2101, 5
      %v2104 = vsel %vm1598, %v2099, %v2103
      %v2106 = vshrl.u32 %v1950, 16
      %v2108 = vrot.slane %v2106, 4
      %v2109 = vshll.u32 %v1950, 16
      %v2111 = vrot.slane %v2109, 5
      %v2112 = vor.u32 %v2108, %v2111
      %v2113 = vrot.slane %v2112, 4
      %v2115 = vshll.u32 %v2006, 16
      %v2117 = vrot.slane %v2115, 5
      %v2118 = vsel %vm1598, %v2113, %v2117
      %vm2127 = vcmp.ge.s32.totalorder %v1522, 64
      %vm2128 = vcmp.lt.s32.totalorder %v1522, 72
      %vm2129 = vmand %vm2127, %vm2128
      %vm2130 = vmpackc.low %vm2129, %vm2129
      %v2131 = vsel %vm2130, %v2020, 0
      %v2132 = vsel %vm2130, %v2034, 0
      %v2133 = vsel %vm2130, %v2048, 0
      %v2134 = vsel %vm2130, %v2062, 0
      %v2135 = vsel %vm2130, %v2076, 0
      %v2136 = vsel %vm2130, %v2090, 0
      %v2137 = vsel %vm2130, %v2104, 0
      %v2138 = vsel %vm2130, %v2118, 0
      %v2139 = vadd.bf16 %v1991, %v2131
      %v2140 = vadd.bf16 %v1992, %v2132
      %v2141 = vadd.bf16 %v1993, %v2133
      %v2142 = vadd.bf16 %v1994, %v2134
      %v2143 = vadd.bf16 %v1995, %v2135
      %v2144 = vadd.bf16 %v1996, %v2136
      %v2145 = vadd.bf16 %v1997, %v2137
      %v2146 = vadd.bf16 %v1998, %v2138
      %v2147 = vld [vmem:[%s4] sm:$0xf]
      %v2148 = vld [vmem:[%s4 + $0x4] sm:$0xf]
      %v2149 = vld [vmem:[%s4 + $0x8] sm:$0xf]
      %v2150 = vld [vmem:[%s4 + $0xc] sm:$0xf]
      %v2151 = vld [vmem:[%s4 + $0x10] sm:$0xf]
      %v2152 = vld [vmem:[%s4 + $0x14] sm:$0xf]
      %v2153 = vld [vmem:[%s4 + $0x18] sm:$0xf]
      %v2154 = vld [vmem:[%s4 + $0x1c] sm:$0xf]
      %v2155 = vld [vmem:[%s4 + $0x20] sm:$0xf]
      %v2156 = vld [vmem:[%s4 + $0x24] sm:$0xf]
      %v2157 = vld [vmem:[%s4 + $0x28] sm:$0xf]
      %v2158 = vld [vmem:[%s4 + $0x2c] sm:$0xf]
      %v2159 = vld [vmem:[%s4 + $0x30] sm:$0xf]
      %v2160 = vld [vmem:[%s4 + $0x34] sm:$0xf]
      %v2161 = vld [vmem:[%s4 + $0x38] sm:$0xf]
      %v2162 = vld [vmem:[%s4 + $0x3c] sm:$0xf]
      %v2163 = vld [vmem:[%s5] sm:$0x1]
      %v2165 = vlaneseq
      %v2166 = vshrl.u32 %v2165, 7
      %v2167 = vsub.s32 0, %v2166
      %v2168 = vrot.slane %v2163, %v2167
      %v2178 = vunpack.c.l.b16 %v2139
      %v2179 = vunpack.c.l.b16 %v2140
      %v2180 = vunpack.c.l.b16 %v2141
      %v2181 = vunpack.c.l.b16 %v2142
      %v2182 = vunpack.c.l.b16 %v2143
      %v2183 = vunpack.c.l.b16 %v2144
      %v2184 = vunpack.c.l.b16 %v2145
      %v2185 = vunpack.c.l.b16 %v2146
      %v2186 = vpack.c.b16 %v2179, %v2178
      %v2187 = vpack.c.b16 %v2181, %v2180
      %v2188 = vpack.c.b16 %v2183, %v2182
      %v2189 = vpack.c.b16 %v2185, %v2184
      %v2210 = vunpack.c.l.b16 %v2147
      %v2211 = vunpack.c.l.b16 %v2148
      %v2212 = vunpack.c.l.b16 %v2149
      %v2213 = vunpack.c.l.b16 %v2150
      %v2214 = vunpack.c.l.b16 %v2151
      %v2215 = vunpack.c.l.b16 %v2152
      %v2216 = vunpack.c.l.b16 %v2153
      %v2217 = vunpack.c.l.b16 %v2154
      %v2218 = vunpack.c.l.b16 %v2155
      %v2219 = vunpack.c.l.b16 %v2156
      %v2220 = vunpack.c.l.b16 %v2157
      %v2221 = vunpack.c.l.b16 %v2158
      %v2222 = vunpack.c.l.b16 %v2159
      %v2223 = vunpack.c.l.b16 %v2160
      %v2224 = vunpack.c.l.b16 %v2161
      %v2225 = vunpack.c.l.b16 %v2162
      %v2226 = vpack.c.b16 %v2211, %v2210
      %v2227 = vpack.c.b16 %v2213, %v2212
      %v2228 = vpack.c.b16 %v2215, %v2214
      %v2229 = vpack.c.b16 %v2217, %v2216
      %v2230 = vpack.c.b16 %v2219, %v2218
      %v2231 = vpack.c.b16 %v2221, %v2220
      %v2232 = vpack.c.b16 %v2223, %v2222
      %v2233 = vpack.c.b16 %v2225, %v2224
      %2242 = vmatprep.subr.bf16.mxu0 0
      %2243 = vmatpush1.bf16.msra.mxu0 %v2233
      %2244 = vmatprep.subr.bf16.mxu0 0
      %2245 = vmatpush1.bf16.msra.mxu0 %v2232
      %2246 = vmatprep.subr.bf16.mxu0 0
      %2247 = vmatpush1.bf16.msra.mxu0 %v2231
      %2248 = vmatprep.subr.bf16.mxu0 0
      %2249 = vmatpush1.bf16.msra.mxu0 %v2230
      %2250 = vmatprep.subr.bf16.mxu0 0
      %2251 = vmatpush1.bf16.msra.mxu0 %v2229
      %2252 = vmatprep.subr.bf16.mxu0 0
      %2253 = vmatpush1.bf16.msra.mxu0 %v2228
      %2254 = vmatprep.subr.bf16.mxu0 0
      %2255 = vmatpush1.bf16.msra.mxu0 %v2227
      %2256 = vmatprep.subr.bf16.mxu0 0
      %2257 = vmatpush1.bf16.msra.mxu0 %v2226
      %2258 = vmatprep.subr.bf16.mxu0 0
      %2259 = vmatpush2.bf16.msra.mxu0 0
      %2260 = vmatprep.subr.bf16.mxu0 0
      %2261 = vmatpush2.bf16.msra.mxu0 0
      %2262 = vmatprep.subr.bf16.mxu0 0
      %2263 = vmatpush2.bf16.msra.mxu0 0
      %2264 = vmatprep.subr.bf16.mxu0 0
      %2265 = vmatpush2.bf16.msra.mxu0 0
      %2266 = vmatprep.subr.bf16.mxu0 0
      %2267 = vmatpush2.bf16.msra.mxu0 0
      %2268 = vmatprep.subr.bf16.mxu0 0
      %2269 = vmatpush2.bf16.msra.mxu0 0
      %2270 = vmatprep.subr.bf16.mxu0 0
      %2271 = vmatpush2.bf16.msra.mxu0 0
      %2272 = vmatprep.subr.bf16.mxu0 0
      %2273 = vmatpush2.bf16.msra.mxu0 0
      %2274 = vmatprep.mubr.bf16.mxu0 0
      %2275 = vmatmul.mubr.bf16.gmra.mxu0 %v2186
      %v2276 = vpop.f32.mrf.mxu0
      %v2277 = vadd.f32 %v2168, %v2276
      %v2278 = vpop.f32.mrf.mxu0
      %v2279 = vpop.f32.mrf.mxu0
      %v2280 = vadd.f32 %v2168, %v2279
      %v2281 = vpop.f32.mrf.mxu0
      %2282 = vmatprep.mubr.bf16.mxu0 0
      %2283 = vmatmul.mubr.bf16.gmra.mxu0 %v2187
      %v2284 = vpop.f32.mrf.mxu0
      %v2285 = vadd.f32 %v2168, %v2284
      %v2286 = vpop.f32.mrf.mxu0
      %v2287 = vpop.f32.mrf.mxu0
      %v2288 = vadd.f32 %v2168, %v2287
      %v2289 = vpop.f32.mrf.mxu0
      %2290 = vmatprep.mubr.bf16.mxu0 0
      %2291 = vmatmul.mubr.bf16.gmra.mxu0 %v2188
      %v2292 = vpop.f32.mrf.mxu0
      %v2293 = vadd.f32 %v2168, %v2292
      %v2294 = vpop.f32.mrf.mxu0
      %v2295 = vpop.f32.mrf.mxu0
      %v2296 = vadd.f32 %v2168, %v2295
      %v2297 = vpop.f32.mrf.mxu0
      %2298 = vmatprep.mubr.bf16.mxu0 0
      %2299 = vmatmul.mubr.bf16.gmra.mxu0 %v2189
      %v2300 = vpop.f32.mrf.mxu0
      %v2301 = vadd.f32 %v2168, %v2300
      %v2302 = vpop.f32.mrf.mxu0
      %v2303 = vpop.f32.mrf.mxu0
      %v2304 = vadd.f32 %v2168, %v2303
      %v2305 = vpop.f32.mrf.mxu0
      %2306 = vdwg.mxu0
      %v2307 = vmax.f32 %v2277, 0.0
      %v2308 = vmax.f32 %v2280, 0.0
      %v2309 = vmax.f32 %v2285, 0.0
      %v2310 = vmax.f32 %v2288, 0.0
      %v2311 = vmax.f32 %v2293, 0.0
      %v2312 = vmax.f32 %v2296, 0.0
      %v2313 = vmax.f32 %v2301, 0.0
      %v2314 = vmax.f32 %v2304, 0.0
      %2315 = vst [vmem:[%s271] sm:$0xff] %v2307
      %2316 = vst [vmem:[%s271 + $0x8] sm:$0xff] %v2308
      %2317 = vst [vmem:[%s271 + $0x10] sm:$0xff] %v2309
      %2318 = vst [vmem:[%s271 + $0x18] sm:$0xff] %v2310
      %2319 = vst [vmem:[%s271 + $0x20] sm:$0xff] %v2311
      %2320 = vst [vmem:[%s271 + $0x28] sm:$0xff] %v2312
      %2321 = vst [vmem:[%s271 + $0x30] sm:$0xff] %v2313
      %2322 = vst [vmem:[%s271 + $0x38] sm:$0xff] %v2314
      %p2323 = scmp.lt.s32.totalorder %s17, 1
      %s2324 = scalar_select %p2323, %s17, 1
      %s2325 = smul.addr %s2324, 8
      %s2326 = smul.addr %s2325, 8
      %s2327 = scalar_lea.vmem %s6, %s2326
      // Predicated region
      $region45: #{basic_block_forward.1} parent=43 // pred_check
        %p2328 = pneg %p171
      $region46: #{basic_block_forward.1} parent=43 // pred_check_branch
        %2330 = sbr.rel (%p2328) target = $region48
      $region47: #{basic_block_forward.1} parent=43 // pred_region
        _
      $region48: #{basic_block_forward.1} parent=43 // pred_fallthru
        _
    $region44: #{basic_block_forward.1} parent=5 // pred_fallthru
      _
    %p2331 = scmp.le.s32.totalorder 2, %s12
    // Predicated region
    $region49: #{basic_block_forward.1} parent=5 // pred_check
      %p2332 = pneg %p2331
    $region50: #{basic_block_forward.1} parent=5 // pred_check_branch
      %2334 = sbr.rel (%p2332) target = $region52
    $region51: #{basic_block_forward.1} parent=5 // pred_region
      %s2335 = ssub.s32 %s12, 2
      // Predicated region
      $region53: #{basic_block_forward.1} parent=51 // pred_check
        %p2336 = pneg %p177
      $region54: #{basic_block_forward.1} parent=51 // pred_check_branch
        %2338 = sbr.rel (%p2336) target = $region56
      $region55: #{basic_block_forward.1} parent=51 // pred_region
        %p2339 = scmp.lt.s32.totalorder %s18, 1
        %s2340 = scalar_select %p2339, %s18, 1
        %s2341 = smul.addr %s2340, 8
        %s2342 = smul.addr %s2341, 8
        %s2343 = scalar_lea.vmem %s6, %s2342
      $region56: #{basic_block_forward.1} parent=51 // pred_fallthru
        _
    $region52: #{basic_block_forward.1} parent=5 // pred_fallthru
      _
  $region6: #{basic_block_forward.1} parent=0 // loop_footer
    %s16 = sadd.s32 1, %s12
  $region7: #{basic_block_forward.1} parent=0 // loop_footer_branch
    %11 = sbr.rel target = $region3
  $region8: #{basic_block_forward.1} parent=0 // loop_exit
    _

</llo_original>
